<compile_context>
chip_gen: v6e
topology: v6e:2x2x1
jax: 0.10.0
libtpu: 0.0.40
codegen_flags: <defaults>
</compile_context>

<pallas_src>
import math

import jax
import jax.numpy as jnp
from jax.experimental import pallas as pl
from jax.experimental.pallas import tpu as pltpu


def _round_up(v, m):
    return ((v + m - 1) // m) * m


def _mlp_kernel(x_ref, w1_ref, b1_ref, w2_ref, b2_ref, w3_ref, b3_ref, o_ref):
    # x arrives as f32 straight from HBM; the bf16 cast is VPU filler that
    # hides under the layer-1 MXU work.
    x = x_ref[...].astype(jnp.bfloat16)                                  # (TM, 784)

    h1 = jnp.dot(x, w1_ref[...], preferred_element_type=jnp.float32)    # (TM, 896) f32
    h1 = jnp.maximum(h1 + b1_ref[...], 0.0)                             # FC1 + ReLU (+ Identity dropout)
    h1 = h1.astype(jnp.bfloat16)

    h2 = jnp.dot(h1, w2_ref[...], preferred_element_type=jnp.float32)   # (TM, 32) f32
    h2 = jnp.maximum(h2 + b2_ref[...], 0.0)                             # FC2 + ReLU
    h2 = h2.astype(jnp.bfloat16)

    y = jnp.dot(h2, w3_ref[...], preferred_element_type=jnp.float32)    # (TM, 128) f32
    o_ref[...] = (y + b3_ref[...]).astype(o_ref.dtype)                  # Linear3 (cols >= 24 are zero weights)


def classifier_1_forward(x, params, *, tm=1024):
    """Forward pass of Classifier_1.

    x: (B, 1, 28, 28) float32.  Returns (B, 24) float32.
    tm: target batch tile.  1024 for v6e/v7x; 512 is plenty on v5e (layer-1
        MXU compute already dominates the per-step overhead there).
    """
    w1, b1, w2, b2, w3, b3 = params
    b = x.shape[0]

    d_in = w1.shape[0]          # 784
    n_hidden = w1.shape[1]      # 784
    n_h2 = w2.shape[1]          # 32
    d_out = w3.shape[1]         # 24

    # Lane-dense padding of hidden/output dims with zero weights (math is
    # unchanged): 784 -> 896 removes the 7/8-masked tail lane-tile on the
    # dominant layer-1 VPU work; 24 -> 128 makes the output store unmasked.
    n_hidden_p = _round_up(n_hidden, 128)   # 896
    d_out_p = _round_up(d_out, 128)         # 128

    w1p = jnp.pad(w1.astype(jnp.bfloat16), ((0, 0), (0, n_hidden_p - n_hidden)))
    b1p = jnp.pad(b1.astype(jnp.float32).reshape(1, -1),
                  ((0, 0), (0, n_hidden_p - n_hidden)))
    w2p = jnp.pad(w2.astype(jnp.bfloat16), ((0, n_hidden_p - n_hidden), (0, 0)))
    b2p = b2.astype(jnp.float32).reshape(1, -1)
    w3p = jnp.pad(w3.astype(jnp.bfloat16), ((0, 0), (0, d_out_p - d_out)))
    b3p = jnp.pad(b3.astype(jnp.float32).reshape(1, -1),
                  ((0, 0), (0, d_out_p - d_out)))

    # x stays f32 and is read exactly once by the kernel (reshape is a view).
    x_flat = x.reshape(b, -1)

    # --- batch tile selection ------------------------------------------------
    if b < 16:
        tm_eff = _round_up(max(b, 1), 8)          # tiny batch: one dense f32 tile
    else:
        tm_eff = min(tm, _round_up(b, 16))        # bf16 packs 16 rows / vreg
        # v7x: keep >= 2 grid blocks so the 'parallel' axis feeds both cores.
        if b >= 512 and tm_eff >= b:
            tm_eff = max(256, _round_up(pl.cdiv(b, 2), 256))

    if tm_eff >= b:
        # Single (possibly oversized) block: pad the batch so the block tiles
        # the array exactly.
        b_arr = tm_eff
        if b_arr != b:
            x_flat = jnp.pad(x_flat, ((0, b_arr - b), (0, 0)))
    else:
        # b >= tile: no extra pass over x; Pallas handles the ragged final
        # block (OOB reads unused, OOB writes masked; out rows >= b dropped).
        b_arr = b

    n_blocks = pl.cdiv(b_arr, tm_eff)

    flops = 2 * b_arr * (d_in * n_hidden_p + n_hidden_p * n_h2 + n_h2 * d_out_p)
    bytes_accessed = (x_flat.size * 4
                      + (w1p.size + w2p.size + w3p.size) * 2
                      + (b1p.size + b2p.size + b3p.size) * 4
                      + b_arr * d_out_p * 4)

    grid_spec = pltpu.PrefetchScalarGridSpec(
        num_scalar_prefetch=0,
        grid=(n_blocks,),
        in_specs=[
            pl.BlockSpec((tm_eff, d_in), lambda i: (i, 0)),   # x tile (pipelined)
            # Constant index maps -> weights/biases DMA'd once, VMEM-resident.
            pl.BlockSpec(w1p.shape, lambda i: (0, 0)),
            pl.BlockSpec(b1p.shape, lambda i: (0, 0)),
            pl.BlockSpec(w2p.shape, lambda i: (0, 0)),
            pl.BlockSpec(b2p.shape, lambda i: (0, 0)),
            pl.BlockSpec(w3p.shape, lambda i: (0, 0)),
            pl.BlockSpec(b3p.shape, lambda i: (0, 0)),
        ],
        out_specs=pl.BlockSpec((tm_eff, d_out_p), lambda i: (i, 0)),
    )

    out = pl.pallas_call(
        _mlp_kernel,
        out_shape=jax.ShapeDtypeStruct((b_arr, d_out_p), jnp.float32),
        grid_spec=grid_spec,
        compiler_params=pltpu.CompilerParams(
            dimension_semantics=("parallel",),
            vmem_limit_bytes=32 << 20,   # fits v7x's 64 MiB physical VMEM
        ),
        cost_estimate=pl.CostEstimate(
            flops=flops, transcendentals=0, bytes_accessed=bytes_accessed),
    )(x_flat, w1p, b1p, w2p, b2p, w3p, b3p)

    return out[:b, :d_out]


def init_params(key, input_dim=28 * 28, n_neurons_molt_factor=1.0):
    """Deterministic init mimicking nn.Linear's U(-1/sqrt(fan_in), 1/sqrt(fan_in))."""
    n_neurons = int(input_dim * n_neurons_molt_factor)
    dims = [(input_dim, n_neurons), (n_neurons, 32), (32, 24)]
    params = []
    for i, (fan_in, fan_out) in enumerate(dims):
        kw, kb = jax.random.split(jax.random.fold_in(key, i))
        bound = 1.0 / math.sqrt(fan_in)
        w = jax.random.uniform(kw, (fan_in, fan_out), jnp.float32, -bound, bound)
        bias = jax.random.uniform(kb, (1, fan_out), jnp.float32, -bound, bound)
        params.extend([w, bias])
    return tuple(params)


def reference_forward(x, params):
    """Pure-JAX f32 reference for correctness checks."""
    w1, b1, w2, b2, w3, b3 = params
    h = x.reshape(x.shape[0], -1)
    h = jnp.maximum(h @ w1 + b1, 0.0)
    h = jnp.maximum(h @ w2 + b2, 0.0)
    return h @ w3 + b3


if __name__ == "__main__":
    key = jax.random.PRNGKey(0)
    k_x, k_p = jax.random.split(key)

    params = init_params(k_p)

    # Small input consistent with the module: (B, 1, 28, 28) NCHW.
    B = 8
    x = jax.random.normal(k_x, (B, 1, 28, 28), jnp.float32)
    y = jax.block_until_ready(classifier_1_forward(x, params))
    y_ref = reference_forward(x, params)
    assert y.shape == (B, 24), y.shape
    # bf16 weights/activations with f32 accumulation -> loosened tolerance.
    assert jnp.allclose(y, y_ref, atol=5e-2, rtol=5e-2), "mismatch vs JAX reference (B=8)"

    # Exercise the multi-block grid and the ragged final block (40 rows, tile 16).
    B2 = 40
    x2 = jax.random.normal(jax.random.fold_in(k_x, 1), (B2, 1, 28, 28), jnp.float32)
    y2 = jax.block_until_ready(classifier_1_forward(x2, params, tm=16))
    y2_ref = reference_forward(x2, params)
    assert y2.shape == (B2, 24), y2.shape
    assert jnp.allclose(y2, y2_ref, atol=5e-2, rtol=5e-2), "mismatch vs JAX reference (B=40)"

    print("KERNEL_OK")
</pallas_src>

<mosaic_0001>
module attributes {stable_mosaic.version = 11 : i64} {
  func.func @_mlp_kernel(%arg0: i32, %arg1: memref<8x784xf32, #tpu.memory_space<vmem>>, %arg2: memref<784x896xbf16, #tpu.memory_space<vmem>>, %arg3: memref<1x896xf32, #tpu.memory_space<vmem>>, %arg4: memref<896x32xbf16, #tpu.memory_space<vmem>>, %arg5: memref<1x32xf32, #tpu.memory_space<vmem>>, %arg6: memref<32x128xbf16, #tpu.memory_space<vmem>>, %arg7: memref<1x128xf32, #tpu.memory_space<vmem>>, %arg8: memref<8x128xf32, #tpu.memory_space<vmem>>) attributes {dimension_semantics = [#tpu.dimension_semantics<parallel>], iteration_bounds = array<i64: 1>, scalar_prefetch = 0 : i64, scratch_operands = 0 : i64, tpu.core_type = #tpu.core_type<tc>, window_params = [{transform_indices = @transform_0, window_bounds = array<i64: 8, 784>}, {pipeline_mode = #tpu.pipeline_mode<synchronous>, transform_indices = @transform_1, window_bounds = array<i64: 784, 896>}, {pipeline_mode = #tpu.pipeline_mode<synchronous>, transform_indices = @transform_2, window_bounds = array<i64: 1, 896>}, {pipeline_mode = #tpu.pipeline_mode<synchronous>, transform_indices = @transform_3, window_bounds = array<i64: 896, 32>}, {pipeline_mode = #tpu.pipeline_mode<synchronous>, transform_indices = @transform_4, window_bounds = array<i64: 1, 32>}, {pipeline_mode = #tpu.pipeline_mode<synchronous>, transform_indices = @transform_5, window_bounds = array<i64: 32, 128>}, {pipeline_mode = #tpu.pipeline_mode<synchronous>, transform_indices = @transform_6, window_bounds = array<i64: 1, 128>}, {transform_indices = @transform_7, window_bounds = array<i64: 8, 128>}]} {
    %c0 = arith.constant 0 : index
    %c0_0 = arith.constant 0 : index
    %0 = vector.load %arg1[%c0, %c0_0] : memref<8x784xf32, #tpu.memory_space<vmem>>, vector<8x784xf32>
    %1 = arith.truncf %0 : vector<8x784xf32> to vector<8x784xbf16>
    %c0_1 = arith.constant 0 : index
    %c0_2 = arith.constant 0 : index
    %2 = vector.load %arg2[%c0_1, %c0_2] : memref<784x896xbf16, #tpu.memory_space<vmem>>, vector<784x896xbf16>
    %cst = arith.constant dense<0.000000e+00> : vector<8x896xf32>
    %3 = tpu.matmul %1, %2, %cst {dimension_numbers = #tpu.dot_dimension_numbers<[1], [0], [0], [1], [0, 0, 1, 1], [], []>} : vector<8x784xbf16>, vector<784x896xbf16>, vector<8x896xf32> -> vector<8x896xf32>
    %c0_3 = arith.constant 0 : index
    %c0_4 = arith.constant 0 : index
    %4 = vector.load %arg3[%c0_3, %c0_4] : memref<1x896xf32, #tpu.memory_space<vmem>>, vector<1x896xf32>
    %5 = vector.broadcast %4 : vector<1x896xf32> to vector<8x896xf32>
    %6 = arith.addf %3, %5 : vector<8x896xf32>
    %cst_5 = arith.constant 0.000000e+00 : f32
    %7 = vector.broadcast %cst_5 : f32 to vector<8x896xf32>
    %8 = arith.maximumf %6, %7 : vector<8x896xf32>
    %9 = arith.truncf %8 : vector<8x896xf32> to vector<8x896xbf16>
    %c0_6 = arith.constant 0 : index
    %c0_7 = arith.constant 0 : index
    %10 = vector.load %arg4[%c0_6, %c0_7] : memref<896x32xbf16, #tpu.memory_space<vmem>>, vector<896x32xbf16>
    %cst_8 = arith.constant dense<0.000000e+00> : vector<8x32xf32>
    %11 = tpu.matmul %9, %10, %cst_8 {dimension_numbers = #tpu.dot_dimension_numbers<[1], [0], [0], [1], [0, 0, 1, 1], [], []>} : vector<8x896xbf16>, vector<896x32xbf16>, vector<8x32xf32> -> vector<8x32xf32>
    %c0_9 = arith.constant 0 : index
    %c0_10 = arith.constant 0 : index
    %12 = vector.load %arg5[%c0_9, %c0_10] : memref<1x32xf32, #tpu.memory_space<vmem>>, vector<1x32xf32>
    %13 = vector.broadcast %12 : vector<1x32xf32> to vector<8x32xf32>
    %14 = arith.addf %11, %13 : vector<8x32xf32>
    %cst_11 = arith.constant 0.000000e+00 : f32
    %15 = vector.broadcast %cst_11 : f32 to vector<8x32xf32>
    %16 = arith.maximumf %14, %15 : vector<8x32xf32>
    %17 = arith.truncf %16 : vector<8x32xf32> to vector<8x32xbf16>
    %c0_12 = arith.constant 0 : index
    %c0_13 = arith.constant 0 : index
    %18 = vector.load %arg6[%c0_12, %c0_13] : memref<32x128xbf16, #tpu.memory_space<vmem>>, vector<32x128xbf16>
    %cst_14 = arith.constant dense<0.000000e+00> : vector<8x128xf32>
    %19 = tpu.matmul %17, %18, %cst_14 {dimension_numbers = #tpu.dot_dimension_numbers<[1], [0], [0], [1], [0, 0, 1, 1], [], []>} : vector<8x32xbf16>, vector<32x128xbf16>, vector<8x128xf32> -> vector<8x128xf32>
    %c0_15 = arith.constant 0 : index
    %c0_16 = arith.constant 0 : index
    %20 = vector.load %arg7[%c0_15, %c0_16] : memref<1x128xf32, #tpu.memory_space<vmem>>, vector<1x128xf32>
    %21 = vector.broadcast %20 : vector<1x128xf32> to vector<8x128xf32>
    %22 = arith.addf %19, %21 : vector<8x128xf32>
    %c0_17 = arith.constant 0 : index
    %c0_18 = arith.constant 0 : index
    %23 = vector.load %arg8[%c0_17, %c0_18] : memref<8x128xf32, #tpu.memory_space<vmem>>, vector<8x128xf32>
    tpu.vector_store %arg8[%c0_17, %c0_18], %22 {strides = array<i32>} : memref<8x128xf32, #tpu.memory_space<vmem>>, vector<8x128xf32>,
    return
  }
  func.func @transform_0(%arg0: i32) -> (i32, i32) {
    %c0_i32 = arith.constant 0 : i32
    %c0_i32_0 = arith.constant 0 : i32
    return %arg0, %c0_i32 : i32, i32
  }
  func.func @transform_1(%arg0: i32) -> (i32, i32) {
    %c0_i32 = arith.constant 0 : i32
    %c0_i32_0 = arith.constant 0 : i32
    %c0_i32_1 = arith.constant 0 : i32
    return %c0_i32, %c0_i32_0 : i32, i32
  }
  func.func @transform_2(%arg0: i32) -> (i32, i32) {
    %c0_i32 = arith.constant 0 : i32
    %c0_i32_0 = arith.constant 0 : i32
    %c0_i32_1 = arith.constant 0 : i32
    return %c0_i32, %c0_i32_0 : i32, i32
  }
  func.func @transform_3(%arg0: i32) -> (i32, i32) {
    %c0_i32 = arith.constant 0 : i32
    %c0_i32_0 = arith.constant 0 : i32
    %c0_i32_1 = arith.constant 0 : i32
    return %c0_i32, %c0_i32_0 : i32, i32
  }
  func.func @transform_4(%arg0: i32) -> (i32, i32) {
    %c0_i32 = arith.constant 0 : i32
    %c0_i32_0 = arith.constant 0 : i32
    %c0_i32_1 = arith.constant 0 : i32
    return %c0_i32, %c0_i32_0 : i32, i32
  }
  func.func @transform_5(%arg0: i32) -> (i32, i32) {
    %c0_i32 = arith.constant 0 : i32
    %c0_i32_0 = arith.constant 0 : i32
    %c0_i32_1 = arith.constant 0 : i32
    return %c0_i32, %c0_i32_0 : i32, i32
  }
  func.func @transform_6(%arg0: i32) -> (i32, i32) {
    %c0_i32 = arith.constant 0 : i32
    %c0_i32_0 = arith.constant 0 : i32
    %c0_i32_1 = arith.constant 0 : i32
    return %c0_i32, %c0_i32_0 : i32, i32
  }
  func.func @transform_7(%arg0: i32) -> (i32, i32) {
    %c0_i32 = arith.constant 0 : i32
    %c0_i32_0 = arith.constant 0 : i32
    return %arg0, %c0_i32 : i32, i32
  }
}

</mosaic_0001>

<llo_original>
// kernel: tpu_custom_call.1
$region0: #{tpu_custom_call.1}
  #allocation0 [shape = 'u32[]', space=smem, size = 0x4, offset = 0x4, fixed_abs, tag = 'smem constant byte address 0x4 - core index']
  #allocation1 [shape = 'u32[144,128]{1,0:T(1,128)}', space=vmem, size = 0x12000, scoped, tag = 'internal scratch']
  %s0 = inlined_call_operand.hbm [shape: f32[8,784], index: 0, kind: input, shape index: {}]
  %s1 = inlined_call_operand.hbm [shape: bf16[784,896], index: 1, kind: input, shape index: {}]
  %s2 = inlined_call_operand.hbm [shape: f32[1,896], index: 2, kind: input, shape index: {}]
  %s3 = inlined_call_operand.vmem [shape: bf16[896,32], index: 3, kind: input, shape index: {}]
  %s4 = inlined_call_operand.hbm [shape: f32[1,32], index: 4, kind: input, shape index: {}]
  %s5 = inlined_call_operand.hbm [shape: bf16[32,128], index: 5, kind: input, shape index: {}]
  %s6 = inlined_call_operand.hbm [shape: f32[1,128], index: 6, kind: input, shape index: {}]
  %s7 = inlined_call_operand.hbm [shape: f32[8,128], index: 7, kind: output, shape index: {}]
  %s8 = sld [smem:[#allocation0]]
  $region62: #{tpu_custom_call.1} parent=0
    _
  %s10 = ssub.s32 1, %s8
  %s11 = scalar_select 0, %s10, %s8
  $region1: #{tpu_custom_call.1} parent=0
    #allocation2 [shape = 'u8[28672]{0}', space=vmem, size = 0x7000, scoped, tag = 'input window, operand 0, single buffered']
    #allocation3 [shape = 's32[1]{0}', space=sflag, size = 0x4, scoped, tag = 'scoped memory for tpu_custom_call.1']
    #allocation4 [shape = 's32[1]{0}', space=sflag, size = 0x4, scoped, tag = 'scoped memory for tpu_custom_call.1']
    #allocation5 [shape = 'u8[1404928]{0}', space=vmem, size = 0x157000, scoped, tag = 'input window, operand 1, single buffered']
    #allocation6 [shape = 's32[1]{0}', space=sflag, size = 0x4, scoped, tag = 'scoped memory for tpu_custom_call.1']
    #allocation7 [shape = 'u8[3584]{0}', space=vmem, size = 0x1000, scoped, tag = 'input window, operand 2, single buffered']
    #allocation8 [shape = 'u8[512]{0}', space=vmem, size = 0x400, scoped, tag = 'input window, operand 4, single buffered']
    #allocation9 [shape = 's32[1]{0}', space=sflag, size = 0x4, scoped, tag = 'scoped memory for tpu_custom_call.1']
    #allocation10 [shape = 'u8[8192]{0}', space=vmem, size = 0x2000, scoped, tag = 'input window, operand 5, single buffered']
    #allocation11 [shape = 'u8[512]{0}', space=vmem, size = 0x400, scoped, tag = 'input window, operand 6, single buffered']
    #allocation12 [shape = 's32[1]{0}', space=sflag, size = 0x4, scoped, tag = 'scoped memory for tpu_custom_call.1']
    #allocation13 [shape = 'u8[4096]{0}', space=vmem, size = 0x1000, scoped, tag = 'output window, operand 0, single buffered']
    %12 = vsyncpa [#allocation3], 0
    %13 = vsyncpa [#allocation6], 0
    %14 = vsyncpa [#allocation9], 0
    %15 = vsyncpa [#allocation12], 0
    %16 = vsyncpa [#allocation4], 0
    // Predicated region
    $region2: #{tpu_custom_call.1} parent=1 // pred_check
      _
    $region3: #{tpu_custom_call.1} parent=1 // pred_check_branch
      %18 = sbr.rel (0) target = $region5
    $region4: #{tpu_custom_call.1} parent=1 // pred_region
      %s20 = ssub.s32 896, 896
      %21 = vsyncadd [#allocation3], %s20
      %s23 = sshll.u32 [#allocation2], 4
      %s24 = int_to_ptr.vmem [resolvable:$true] %s23
      %26 = dma.hbm_to_vmem [thread:$0]  %s0, 896, %s24, [#allocation3]
    $region5: #{tpu_custom_call.1} parent=1 // pred_fallthru
      _
    // Predicated region
    $region6: #{tpu_custom_call.1} parent=1 // pred_check
      _
    $region7: #{tpu_custom_call.1} parent=1 // pred_check_branch
      %28 = sbr.rel (0) target = $region9
    $region8: #{tpu_custom_call.1} parent=1 // pred_region
      %s30 = ssub.s32 43904, 43904
      %31 = vsyncadd [#allocation6], %s30
      %s32 = sshll.u32 [#allocation5], 4
      %s33 = int_to_ptr.vmem [resolvable:$true] %s32
      %38 = dma.hbm_to_vmem [thread:$0]  %s1, 43904, %s33, [#allocation6], 448, 448, 28
    $region9: #{tpu_custom_call.1} parent=1 // pred_fallthru
      _
    // Predicated region
    $region10: #{tpu_custom_call.1} parent=1 // pred_check
      _
    $region11: #{tpu_custom_call.1} parent=1 // pred_check_branch
      %40 = sbr.rel (0) target = $region13
    $region12: #{tpu_custom_call.1} parent=1 // pred_region
      %s42 = ssub.s32 112, 112
      %43 = vsyncadd [#allocation6], %s42
      %s45 = sshll.u32 [#allocation7], 4
      %s46 = int_to_ptr.vmem [resolvable:$true] %s45
      %48 = dma.hbm_to_vmem [thread:$0]  %s2, 112, %s46, [#allocation6]
    $region13: #{tpu_custom_call.1} parent=1 // pred_fallthru
      _
    // Predicated region
    $region14: #{tpu_custom_call.1} parent=1 // pred_check
      _
    $region15: #{tpu_custom_call.1} parent=1 // pred_check_branch
      %50 = sbr.rel (0) target = $region17
    $region16: #{tpu_custom_call.1} parent=1 // pred_region
      _
    $region17: #{tpu_custom_call.1} parent=1 // pred_fallthru
      _
    // Predicated region
    $region18: #{tpu_custom_call.1} parent=1 // pred_check
      _
    $region19: #{tpu_custom_call.1} parent=1 // pred_check_branch
      %52 = sbr.rel (0) target = $region21
    $region20: #{tpu_custom_call.1} parent=1 // pred_region
      %s54 = ssub.s32 16, 16
      %55 = vsyncadd [#allocation9], %s54
      %s57 = sshll.u32 [#allocation8], 4
      %s58 = int_to_ptr.vmem [resolvable:$true] %s57
      %60 = dma.hbm_to_vmem [thread:$0]  %s4, 16, %s58, [#allocation9]
    $region21: #{tpu_custom_call.1} parent=1 // pred_fallthru
      _
    // Predicated region
    $region22: #{tpu_custom_call.1} parent=1 // pred_check
      _
    $region23: #{tpu_custom_call.1} parent=1 // pred_check_branch
      %62 = sbr.rel (0) target = $region25
    $region24: #{tpu_custom_call.1} parent=1 // pred_region
      %s64 = ssub.s32 256, 256
      %65 = vsyncadd [#allocation9], %s64
      %s66 = sshll.u32 [#allocation10], 4
      %s67 = int_to_ptr.vmem [resolvable:$true] %s66
      %72 = dma.hbm_to_vmem [thread:$0]  %s5, 256, %s67, [#allocation9], 64, 64, 4
    $region25: #{tpu_custom_call.1} parent=1 // pred_fallthru
      _
    // Predicated region
    $region26: #{tpu_custom_call.1} parent=1 // pred_check
      _
    $region27: #{tpu_custom_call.1} parent=1 // pred_check_branch
      %74 = sbr.rel (0) target = $region29
    $region28: #{tpu_custom_call.1} parent=1 // pred_region
      %s76 = ssub.s32 16, 16
      %77 = vsyncadd [#allocation12], %s76
      %s79 = sshll.u32 [#allocation11], 4
      %s80 = int_to_ptr.vmem [resolvable:$true] %s79
      %82 = dma.hbm_to_vmem [thread:$0]  %s6, 16, %s80, [#allocation12]
    $region29: #{tpu_custom_call.1} parent=1 // pred_fallthru
      _
    // Predicated region
    $region30: #{tpu_custom_call.1} parent=1 // pred_check
      _
    $region31: #{tpu_custom_call.1} parent=1 // pred_check_branch
      %84 = sbr.rel (0) target = $region33
    $region32: #{tpu_custom_call.1} parent=1 // pred_region
      %85 = dma.done [#allocation3], 896
    $region33: #{tpu_custom_call.1} parent=1 // pred_fallthru
      _
    // Predicated region
    $region34: #{tpu_custom_call.1} parent=1 // pred_check
      _
    $region35: #{tpu_custom_call.1} parent=1 // pred_check_branch
      %87 = sbr.rel (0) target = $region37
    $region36: #{tpu_custom_call.1} parent=1 // pred_region
      %88 = dma.done [#allocation6], 43904
    $region37: #{tpu_custom_call.1} parent=1 // pred_fallthru
      _
    // Predicated region
    $region38: #{tpu_custom_call.1} parent=1 // pred_check
      _
    $region39: #{tpu_custom_call.1} parent=1 // pred_check_branch
      %90 = sbr.rel (0) target = $region41
    $region40: #{tpu_custom_call.1} parent=1 // pred_region
      %91 = dma.done [#allocation6], 112
    $region41: #{tpu_custom_call.1} parent=1 // pred_fallthru
      _
    // Predicated region
    $region42: #{tpu_custom_call.1} parent=1 // pred_check
      _
    $region43: #{tpu_custom_call.1} parent=1 // pred_check_branch
      %93 = sbr.rel (0) target = $region45
    $region44: #{tpu_custom_call.1} parent=1 // pred_region
      %94 = dma.done [#allocation9], 16
    $region45: #{tpu_custom_call.1} parent=1 // pred_fallthru
      _
    // Predicated region
    $region46: #{tpu_custom_call.1} parent=1 // pred_check
      _
    $region47: #{tpu_custom_call.1} parent=1 // pred_check_branch
      %96 = sbr.rel (0) target = $region49
    $region48: #{tpu_custom_call.1} parent=1 // pred_region
      %97 = dma.done [#allocation9], 256
    $region49: #{tpu_custom_call.1} parent=1 // pred_fallthru
      _
    // Predicated region
    $region50: #{tpu_custom_call.1} parent=1 // pred_check
      _
    $region51: #{tpu_custom_call.1} parent=1 // pred_check_branch
      %99 = sbr.rel (0) target = $region53
    $region52: #{tpu_custom_call.1} parent=1 // pred_region
      %100 = dma.done [#allocation12], 16
    $region53: #{tpu_custom_call.1} parent=1 // pred_fallthru
      _
    %v102 = vld [vmem:[#allocation2] sm:$0xff]
    %v103 = vld [vmem:[#allocation2 + $0x8] sm:$0xff]
    %v104 = vld [vmem:[#allocation2 + $0x10] sm:$0xff]
    %v105 = vld [vmem:[#allocation2 + $0x18] sm:$0xff]
    %v106 = vld [vmem:[#allocation2 + $0x20] sm:$0xff]
    %v107 = vld [vmem:[#allocation2 + $0x28] sm:$0xff]
    %v108 = vld [vmem:[#allocation2 + $0x30] sm:$0xff]
    %v109 = vpack.c.bf16 %v102, %v102
    %v110 = vpack.c.bf16 %v103, %v103
    %v111 = vpack.c.bf16 %v104, %v104
    %v112 = vpack.c.bf16 %v105, %v105
    %v113 = vpack.c.bf16 %v106, %v106
    %v114 = vpack.c.bf16 %v107, %v107
    %v115 = vpack.c.bf16 %v108, %v108
    %v116 = vld [vmem:[#allocation5] sm:$0xff]
    %v117 = vld [vmem:[#allocation5 + $0x8] sm:$0xff]
    %v118 = vld [vmem:[#allocation5 + $0x10] sm:$0xff]
    %v119 = vld [vmem:[#allocation5 + $0x18] sm:$0xf]
    %v120 = vld [vmem:[#allocation5 + $0x1c] sm:$0xff]
    %v121 = vld [vmem:[#allocation5 + $0x24] sm:$0xff]
    %v122 = vld [vmem:[#allocation5 + $0x2c] sm:$0xff]
    %v123 = vld [vmem:[#allocation5 + $0x34] sm:$0xf]
    %v124 = vld [vmem:[#allocation5 + $0x38] sm:$0xff]
    %v125 = vld [vmem:[#allocation5 + $0x40] sm:$0xff]
    %v126 = vld [vmem:[#allocation5 + $0x48] sm:$0xff]
    %v127 = vld [vmem:[#allocation5 + $0x50] sm:$0xf]
    %v128 = vld [vmem:[#allocation5 + $0x54] sm:$0xff]
    %v129 = vld [vmem:[#allocation5 + $0x5c] sm:$0xff]
    %v130 = vld [vmem:[#allocation5 + $0x64] sm:$0xff]
    %v131 = vld [vmem:[#allocation5 + $0x6c] sm:$0xf]
    %v132 = vld [vmem:[#allocation5 + $0x70] sm:$0xff]
    %v133 = vld [vmem:[#allocation5 + $0x78] sm:$0xff]
    %v134 = vld [vmem:[#allocation5 + $0x80] sm:$0xff]
    %v135 = vld [vmem:[#allocation5 + $0x88] sm:$0xf]
    %v136 = vld [vmem:[#allocation5 + $0x8c] sm:$0xff]
    %v137 = vld [vmem:[#allocation5 + $0x94] sm:$0xff]
    %v138 = vld [vmem:[#allocation5 + $0x9c] sm:$0xff]
    %v139 = vld [vmem:[#allocation5 + $0xa4] sm:$0xf]
    %v140 = vld [vmem:[#allocation5 + $0xa8] sm:$0xff]
    %v141 = vld [vmem:[#allocation5 + $0xb0] sm:$0xff]
    %v142 = vld [vmem:[#allocation5 + $0xb8] sm:$0xff]
    %v143 = vld [vmem:[#allocation5 + $0xc0] sm:$0xf]
    %v144 = vld [vmem:[#allocation5 + $0xc4] sm:$0xff]
    %v145 = vld [vmem:[#allocation5 + $0xcc] sm:$0xff]
    %v146 = vld [vmem:[#allocation5 + $0xd4] sm:$0xff]
    %v147 = vld [vmem:[#allocation5 + $0xdc] sm:$0xf]
    %v148 = vld [vmem:[#allocation5 + $0xe0] sm:$0xff]
    %v149 = vld [vmem:[#allocation5 + $0xe8] sm:$0xff]
    %v150 = vld [vmem:[#allocation5 + $0xf0] sm:$0xff]
    %v151 = vld [vmem:[#allocation5 + $0xf8] sm:$0xf]
    %v152 = vld [vmem:[#allocation5 + $0xfc] sm:$0xff]
    %v153 = vld [vmem:[#allocation5 + $0x104] sm:$0xff]
    %v154 = vld [vmem:[#allocation5 + $0x10c] sm:$0xff]
    %v155 = vld [vmem:[#allocation5 + $0x114] sm:$0xf]
    %v156 = vld [vmem:[#allocation5 + $0x118] sm:$0xff]
    %v157 = vld [vmem:[#allocation5 + $0x120] sm:$0xff]
    %v158 = vld [vmem:[#allocation5 + $0x128] sm:$0xff]
    %v159 = vld [vmem:[#allocation5 + $0x130] sm:$0xf]
    %v160 = vld [vmem:[#allocation5 + $0x134] sm:$0xff]
    %v161 = vld [vmem:[#allocation5 + $0x13c] sm:$0xff]
    %v162 = vld [vmem:[#allocation5 + $0x144] sm:$0xff]
    %v163 = vld [vmem:[#allocation5 + $0x14c] sm:$0xf]
    %v164 = vld [vmem:[#allocation5 + $0x150] sm:$0xff]
    %v165 = vld [vmem:[#allocation5 + $0x158] sm:$0xff]
    %v166 = vld [vmem:[#allocation5 + $0x160] sm:$0xff]
    %v167 = vld [vmem:[#allocation5 + $0x168] sm:$0xf]
    %v168 = vld [vmem:[#allocation5 + $0x16c] sm:$0xff]
    %v169 = vld [vmem:[#allocation5 + $0x174] sm:$0xff]
    %v170 = vld [vmem:[#allocation5 + $0x17c] sm:$0xff]
    %v171 = vld [vmem:[#allocation5 + $0x184] sm:$0xf]
    %v172 = vld [vmem:[#allocation5 + $0x188] sm:$0xff]
    %v173 = vld [vmem:[#allocation5 + $0x190] sm:$0xff]
    %v174 = vld [vmem:[#allocation5 + $0x198] sm:$0xff]
    %v175 = vld [vmem:[#allocation5 + $0x1a0] sm:$0xf]
    %v176 = vld [vmem:[#allocation5 + $0x1a4] sm:$0xff]
    %v177 = vld [vmem:[#allocation5 + $0x1ac] sm:$0xff]
    %v178 = vld [vmem:[#allocation5 + $0x1b4] sm:$0xff]
    %v179 = vld [vmem:[#allocation5 + $0x1bc] sm:$0xf]
    %v180 = vld [vmem:[#allocation5 + $0x1c0] sm:$0xff]
    %v181 = vld [vmem:[#allocation5 + $0x1c8] sm:$0xff]
    %v182 = vld [vmem:[#allocation5 + $0x1d0] sm:$0xff]
    %v183 = vld [vmem:[#allocation5 + $0x1d8] sm:$0xf]
    %v184 = vld [vmem:[#allocation5 + $0x1dc] sm:$0xff]
    %v185 = vld [vmem:[#allocation5 + $0x1e4] sm:$0xff]
    %v186 = vld [vmem:[#allocation5 + $0x1ec] sm:$0xff]
    %v187 = vld [vmem:[#allocation5 + $0x1f4] sm:$0xf]
    %v188 = vld [vmem:[#allocation5 + $0x1f8] sm:$0xff]
    %v189 = vld [vmem:[#allocation5 + $0x200] sm:$0xff]
    %v190 = vld [vmem:[#allocation5 + $0x208] sm:$0xff]
    %v191 = vld [vmem:[#allocation5 + $0x210] sm:$0xf]
    %v192 = vld [vmem:[#allocation5 + $0x214] sm:$0xff]
    %v193 = vld [vmem:[#allocation5 + $0x21c] sm:$0xff]
    %v194 = vld [vmem:[#allocation5 + $0x224] sm:$0xff]
    %v195 = vld [vmem:[#allocation5 + $0x22c] sm:$0xf]
    %v196 = vld [vmem:[#allocation5 + $0x230] sm:$0xff]
    %v197 = vld [vmem:[#allocation5 + $0x238] sm:$0xff]
    %v198 = vld [vmem:[#allocation5 + $0x240] sm:$0xff]
    %v199 = vld [vmem:[#allocation5 + $0x248] sm:$0xf]
    %v200 = vld [vmem:[#allocation5 + $0x24c] sm:$0xff]
    %v201 = vld [vmem:[#allocation5 + $0x254] sm:$0xff]
    %v202 = vld [vmem:[#allocation5 + $0x25c] sm:$0xff]
    %v203 = vld [vmem:[#allocation5 + $0x264] sm:$0xf]
    %v204 = vld [vmem:[#allocation5 + $0x268] sm:$0xff]
    %v205 = vld [vmem:[#allocation5 + $0x270] sm:$0xff]
    %v206 = vld [vmem:[#allocation5 + $0x278] sm:$0xff]
    %v207 = vld [vmem:[#allocation5 + $0x280] sm:$0xf]
    %v208 = vld [vmem:[#allocation5 + $0x284] sm:$0xff]
    %v209 = vld [vmem:[#allocation5 + $0x28c] sm:$0xff]
    %v210 = vld [vmem:[#allocation5 + $0x294] sm:$0xff]
    %v211 = vld [vmem:[#allocation5 + $0x29c] sm:$0xf]
    %v212 = vld [vmem:[#allocation5 + $0x2a0] sm:$0xff]
    %v213 = vld [vmem:[#allocation5 + $0x2a8] sm:$0xff]
    %v214 = vld [vmem:[#allocation5 + $0x2b0] sm:$0xff]
    %v215 = vld [vmem:[#allocation5 + $0x2b8] sm:$0xf]
    %v216 = vld [vmem:[#allocation5 + $0x2bc] sm:$0xff]
    %v217 = vld [vmem:[#allocation5 + $0x2c4] sm:$0xff]
    %v218 = vld [vmem:[#allocation5 + $0x2cc] sm:$0xff]
    %v219 = vld [vmem:[#allocation5 + $0x2d4] sm:$0xf]
    %v220 = vld [vmem:[#allocation5 + $0x2d8] sm:$0xff]
    %v221 = vld [vmem:[#allocation5 + $0x2e0] sm:$0xff]
    %v222 = vld [vmem:[#allocation5 + $0x2e8] sm:$0xff]
    %v223 = vld [vmem:[#allocation5 + $0x2f0] sm:$0xf]
    %v224 = vld [vmem:[#allocation5 + $0x2f4] sm:$0xff]
    %v225 = vld [vmem:[#allocation5 + $0x2fc] sm:$0xff]
    %v226 = vld [vmem:[#allocation5 + $0x304] sm:$0xff]
    %v227 = vld [vmem:[#allocation5 + $0x30c] sm:$0xf]
    %v228 = vld [vmem:[#allocation5 + $0x310] sm:$0xff]
    %v229 = vld [vmem:[#allocation5 + $0x318] sm:$0xff]
    %v230 = vld [vmem:[#allocation5 + $0x320] sm:$0xff]
    %v231 = vld [vmem:[#allocation5 + $0x328] sm:$0xf]
    %v232 = vld [vmem:[#allocation5 + $0x32c] sm:$0xff]
    %v233 = vld [vmem:[#allocation5 + $0x334] sm:$0xff]
    %v234 = vld [vmem:[#allocation5 + $0x33c] sm:$0xff]
    %v235 = vld [vmem:[#allocation5 + $0x344] sm:$0xf]
    %v236 = vld [vmem:[#allocation5 + $0x348] sm:$0xff]
    %v237 = vld [vmem:[#allocation5 + $0x350] sm:$0xff]
    %v238 = vld [vmem:[#allocation5 + $0x358] sm:$0xff]
    %v239 = vld [vmem:[#allocation5 + $0x360] sm:$0xf]
    %v240 = vld [vmem:[#allocation5 + $0x364] sm:$0xff]
    %v241 = vld [vmem:[#allocation5 + $0x36c] sm:$0xff]
    %v242 = vld [vmem:[#allocation5 + $0x374] sm:$0xff]
    %v243 = vld [vmem:[#allocation5 + $0x37c] sm:$0xf]
    %v244 = vld [vmem:[#allocation5 + $0x380] sm:$0xff]
    %v245 = vld [vmem:[#allocation5 + $0x388] sm:$0xff]
    %v246 = vld [vmem:[#allocation5 + $0x390] sm:$0xff]
    %v247 = vld [vmem:[#allocation5 + $0x398] sm:$0xf]
    %v248 = vld [vmem:[#allocation5 + $0x39c] sm:$0xff]
    %v249 = vld [vmem:[#allocation5 + $0x3a4] sm:$0xff]
    %v250 = vld [vmem:[#allocation5 + $0x3ac] sm:$0xff]
    %v251 = vld [vmem:[#allocation5 + $0x3b4] sm:$0xf]
    %v252 = vld [vmem:[#allocation5 + $0x3b8] sm:$0xff]
    %v253 = vld [vmem:[#allocation5 + $0x3c0] sm:$0xff]
    %v254 = vld [vmem:[#allocation5 + $0x3c8] sm:$0xff]
    %v255 = vld [vmem:[#allocation5 + $0x3d0] sm:$0xf]
    %v256 = vld [vmem:[#allocation5 + $0x3d4] sm:$0xff]
    %v257 = vld [vmem:[#allocation5 + $0x3dc] sm:$0xff]
    %v258 = vld [vmem:[#allocation5 + $0x3e4] sm:$0xff]
    %v259 = vld [vmem:[#allocation5 + $0x3ec] sm:$0xf]
    %v260 = vld [vmem:[#allocation5 + $0x3f0] sm:$0xff]
    %v261 = vld [vmem:[#allocation5 + $0x3f8] sm:$0xff]
    %v262 = vld [vmem:[#allocation5 + $0x400] sm:$0xff]
    %v263 = vld [vmem:[#allocation5 + $0x408] sm:$0xf]
    %v264 = vld [vmem:[#allocation5 + $0x40c] sm:$0xff]
    %v265 = vld [vmem:[#allocation5 + $0x414] sm:$0xff]
    %v266 = vld [vmem:[#allocation5 + $0x41c] sm:$0xff]
    %v267 = vld [vmem:[#allocation5 + $0x424] sm:$0xf]
    %v268 = vld [vmem:[#allocation5 + $0x428] sm:$0xff]
    %v269 = vld [vmem:[#allocation5 + $0x430] sm:$0xff]
    %v270 = vld [vmem:[#allocation5 + $0x438] sm:$0xff]
    %v271 = vld [vmem:[#allocation5 + $0x440] sm:$0xf]
    %v272 = vld [vmem:[#allocation5 + $0x444] sm:$0xff]
    %v273 = vld [vmem:[#allocation5 + $0x44c] sm:$0xff]
    %v274 = vld [vmem:[#allocation5 + $0x454] sm:$0xff]
    %v275 = vld [vmem:[#allocation5 + $0x45c] sm:$0xf]
    %v276 = vld [vmem:[#allocation5 + $0x460] sm:$0xff]
    %v277 = vld [vmem:[#allocation5 + $0x468] sm:$0xff]
    %v278 = vld [vmem:[#allocation5 + $0x470] sm:$0xff]
    %v279 = vld [vmem:[#allocation5 + $0x478] sm:$0xf]
    %v280 = vld [vmem:[#allocation5 + $0x47c] sm:$0xff]
    %v281 = vld [vmem:[#allocation5 + $0x484] sm:$0xff]
    %v282 = vld [vmem:[#allocation5 + $0x48c] sm:$0xff]
    %v283 = vld [vmem:[#allocation5 + $0x494] sm:$0xf]
    %v284 = vld [vmem:[#allocation5 + $0x498] sm:$0xff]
    %v285 = vld [vmem:[#allocation5 + $0x4a0] sm:$0xff]
    %v286 = vld [vmem:[#allocation5 + $0x4a8] sm:$0xff]
    %v287 = vld [vmem:[#allocation5 + $0x4b0] sm:$0xf]
    %v288 = vld [vmem:[#allocation5 + $0x4b4] sm:$0xff]
    %v289 = vld [vmem:[#allocation5 + $0x4bc] sm:$0xff]
    %v290 = vld [vmem:[#allocation5 + $0x4c4] sm:$0xff]
    %v291 = vld [vmem:[#allocation5 + $0x4cc] sm:$0xf]
    %v292 = vld [vmem:[#allocation5 + $0x4d0] sm:$0xff]
    %v293 = vld [vmem:[#allocation5 + $0x4d8] sm:$0xff]
    %v294 = vld [vmem:[#allocation5 + $0x4e0] sm:$0xff]
    %v295 = vld [vmem:[#allocation5 + $0x4e8] sm:$0xf]
    %v296 = vld [vmem:[#allocation5 + $0x4ec] sm:$0xff]
    %v297 = vld [vmem:[#allocation5 + $0x4f4] sm:$0xff]
    %v298 = vld [vmem:[#allocation5 + $0x4fc] sm:$0xff]
    %v299 = vld [vmem:[#allocation5 + $0x504] sm:$0xf]
    %v300 = vld [vmem:[#allocation5 + $0x508] sm:$0xff]
    %v301 = vld [vmem:[#allocation5 + $0x510] sm:$0xff]
    %v302 = vld [vmem:[#allocation5 + $0x518] sm:$0xff]
    %v303 = vld [vmem:[#allocation5 + $0x520] sm:$0xf]
    %v304 = vld [vmem:[#allocation5 + $0x524] sm:$0xff]
    %v305 = vld [vmem:[#allocation5 + $0x52c] sm:$0xff]
    %v306 = vld [vmem:[#allocation5 + $0x534] sm:$0xff]
    %v307 = vld [vmem:[#allocation5 + $0x53c] sm:$0xf]
    %v308 = vld [vmem:[#allocation5 + $0x540] sm:$0xff]
    %v309 = vld [vmem:[#allocation5 + $0x548] sm:$0xff]
    %v310 = vld [vmem:[#allocation5 + $0x550] sm:$0xff]
    %v311 = vld [vmem:[#allocation5 + $0x558] sm:$0xf]
    %v312 = vld [vmem:[#allocation5 + $0x55c] sm:$0xff]
    %v313 = vld [vmem:[#allocation5 + $0x564] sm:$0xff]
    %v314 = vld [vmem:[#allocation5 + $0x56c] sm:$0xff]
    %v315 = vld [vmem:[#allocation5 + $0x574] sm:$0xf]
    %v316 = vld [vmem:[#allocation5 + $0x578] sm:$0xff]
    %v317 = vld [vmem:[#allocation5 + $0x580] sm:$0xff]
    %v318 = vld [vmem:[#allocation5 + $0x588] sm:$0xff]
    %v319 = vld [vmem:[#allocation5 + $0x590] sm:$0xf]
    %v320 = vld [vmem:[#allocation5 + $0x594] sm:$0xff]
    %v321 = vld [vmem:[#allocation5 + $0x59c] sm:$0xff]
    %v322 = vld [vmem:[#allocation5 + $0x5a4] sm:$0xff]
    %v323 = vld [vmem:[#allocation5 + $0x5ac] sm:$0xf]
    %v324 = vld [vmem:[#allocation5 + $0x5b0] sm:$0xff]
    %v325 = vld [vmem:[#allocation5 + $0x5b8] sm:$0xff]
    %v326 = vld [vmem:[#allocation5 + $0x5c0] sm:$0xff]
    %v327 = vld [vmem:[#allocation5 + $0x5c8] sm:$0xf]
    %v328 = vld [vmem:[#allocation5 + $0x5cc] sm:$0xff]
    %v329 = vld [vmem:[#allocation5 + $0x5d4] sm:$0xff]
    %v330 = vld [vmem:[#allocation5 + $0x5dc] sm:$0xff]
    %v331 = vld [vmem:[#allocation5 + $0x5e4] sm:$0xf]
    %v332 = vld [vmem:[#allocation5 + $0x5e8] sm:$0xff]
    %v333 = vld [vmem:[#allocation5 + $0x5f0] sm:$0xff]
    %v334 = vld [vmem:[#allocation5 + $0x5f8] sm:$0xff]
    %v335 = vld [vmem:[#allocation5 + $0x600] sm:$0xf]
    %v336 = vld [vmem:[#allocation5 + $0x604] sm:$0xff]
    %v337 = vld [vmem:[#allocation5 + $0x60c] sm:$0xff]
    %v338 = vld [vmem:[#allocation5 + $0x614] sm:$0xff]
    %v339 = vld [vmem:[#allocation5 + $0x61c] sm:$0xf]
    %v340 = vld [vmem:[#allocation5 + $0x620] sm:$0xff]
    %v341 = vld [vmem:[#allocation5 + $0x628] sm:$0xff]
    %v342 = vld [vmem:[#allocation5 + $0x630] sm:$0xff]
    %v343 = vld [vmem:[#allocation5 + $0x638] sm:$0xf]
    %v344 = vld [vmem:[#allocation5 + $0x63c] sm:$0xff]
    %v345 = vld [vmem:[#allocation5 + $0x644] sm:$0xff]
    %v346 = vld [vmem:[#allocation5 + $0x64c] sm:$0xff]
    %v347 = vld [vmem:[#allocation5 + $0x654] sm:$0xf]
    %v348 = vld [vmem:[#allocation5 + $0x658] sm:$0xff]
    %v349 = vld [vmem:[#allocation5 + $0x660] sm:$0xff]
    %v350 = vld [vmem:[#allocation5 + $0x668] sm:$0xff]
    %v351 = vld [vmem:[#allocation5 + $0x670] sm:$0xf]
    %v352 = vld [vmem:[#allocation5 + $0x674] sm:$0xff]
    %v353 = vld [vmem:[#allocation5 + $0x67c] sm:$0xff]
    %v354 = vld [vmem:[#allocation5 + $0x684] sm:$0xff]
    %v355 = vld [vmem:[#allocation5 + $0x68c] sm:$0xf]
    %v356 = vld [vmem:[#allocation5 + $0x690] sm:$0xff]
    %v357 = vld [vmem:[#allocation5 + $0x698] sm:$0xff]
    %v358 = vld [vmem:[#allocation5 + $0x6a0] sm:$0xff]
    %v359 = vld [vmem:[#allocation5 + $0x6a8] sm:$0xf]
    %v360 = vld [vmem:[#allocation5 + $0x6ac] sm:$0xff]
    %v361 = vld [vmem:[#allocation5 + $0x6b4] sm:$0xff]
    %v362 = vld [vmem:[#allocation5 + $0x6bc] sm:$0xff]
    %v363 = vld [vmem:[#allocation5 + $0x6c4] sm:$0xf]
    %v364 = vld [vmem:[#allocation5 + $0x6c8] sm:$0xff]
    %v365 = vld [vmem:[#allocation5 + $0x6d0] sm:$0xff]
    %v366 = vld [vmem:[#allocation5 + $0x6d8] sm:$0xff]
    %v367 = vld [vmem:[#allocation5 + $0x6e0] sm:$0xf]
    %v368 = vld [vmem:[#allocation5 + $0x6e4] sm:$0xff]
    %v369 = vld [vmem:[#allocation5 + $0x6ec] sm:$0xff]
    %v370 = vld [vmem:[#allocation5 + $0x6f4] sm:$0xff]
    %v371 = vld [vmem:[#allocation5 + $0x6fc] sm:$0xf]
    %v372 = vld [vmem:[#allocation5 + $0x700] sm:$0xff]
    %v373 = vld [vmem:[#allocation5 + $0x708] sm:$0xff]
    %v374 = vld [vmem:[#allocation5 + $0x710] sm:$0xff]
    %v375 = vld [vmem:[#allocation5 + $0x718] sm:$0xf]
    %v376 = vld [vmem:[#allocation5 + $0x71c] sm:$0xff]
    %v377 = vld [vmem:[#allocation5 + $0x724] sm:$0xff]
    %v378 = vld [vmem:[#allocation5 + $0x72c] sm:$0xff]
    %v379 = vld [vmem:[#allocation5 + $0x734] sm:$0xf]
    %v380 = vld [vmem:[#allocation5 + $0x738] sm:$0xff]
    %v381 = vld [vmem:[#allocation5 + $0x740] sm:$0xff]
    %v382 = vld [vmem:[#allocation5 + $0x748] sm:$0xff]
    %v383 = vld [vmem:[#allocation5 + $0x750] sm:$0xf]
    %v384 = vld [vmem:[#allocation5 + $0x754] sm:$0xff]
    %v385 = vld [vmem:[#allocation5 + $0x75c] sm:$0xff]
    %v386 = vld [vmem:[#allocation5 + $0x764] sm:$0xff]
    %v387 = vld [vmem:[#allocation5 + $0x76c] sm:$0xf]
    %v388 = vld [vmem:[#allocation5 + $0x770] sm:$0xff]
    %v389 = vld [vmem:[#allocation5 + $0x778] sm:$0xff]
    %v390 = vld [vmem:[#allocation5 + $0x780] sm:$0xff]
    %v391 = vld [vmem:[#allocation5 + $0x788] sm:$0xf]
    %v392 = vld [vmem:[#allocation5 + $0x78c] sm:$0xff]
    %v393 = vld [vmem:[#allocation5 + $0x794] sm:$0xff]
    %v394 = vld [vmem:[#allocation5 + $0x79c] sm:$0xff]
    %v395 = vld [vmem:[#allocation5 + $0x7a4] sm:$0xf]
    %v396 = vld [vmem:[#allocation5 + $0x7a8] sm:$0xff]
    %v397 = vld [vmem:[#allocation5 + $0x7b0] sm:$0xff]
    %v398 = vld [vmem:[#allocation5 + $0x7b8] sm:$0xff]
    %v399 = vld [vmem:[#allocation5 + $0x7c0] sm:$0xf]
    %v400 = vld [vmem:[#allocation5 + $0x7c4] sm:$0xff]
    %v401 = vld [vmem:[#allocation5 + $0x7cc] sm:$0xff]
    %v402 = vld [vmem:[#allocation5 + $0x7d4] sm:$0xff]
    %v403 = vld [vmem:[#allocation5 + $0x7dc] sm:$0xf]
    %v404 = vld [vmem:[#allocation5 + $0x7e0] sm:$0xff]
    %v405 = vld [vmem:[#allocation5 + $0x7e8] sm:$0xff]
    %v406 = vld [vmem:[#allocation5 + $0x7f0] sm:$0xff]
    %v407 = vld [vmem:[#allocation5 + $0x7f8] sm:$0xf]
    %v408 = vld [vmem:[#allocation5 + $0x7fc] sm:$0xff]
    %v409 = vld [vmem:[#allocation5 + $0x804] sm:$0xff]
    %v410 = vld [vmem:[#allocation5 + $0x80c] sm:$0xff]
    %v411 = vld [vmem:[#allocation5 + $0x814] sm:$0xf]
    %v412 = vld [vmem:[#allocation5 + $0x818] sm:$0xff]
    %v413 = vld [vmem:[#allocation5 + $0x820] sm:$0xff]
    %v414 = vld [vmem:[#allocation5 + $0x828] sm:$0xff]
    %v415 = vld [vmem:[#allocation5 + $0x830] sm:$0xf]
    %v416 = vld [vmem:[#allocation5 + $0x834] sm:$0xff]
    %v417 = vld [vmem:[#allocation5 + $0x83c] sm:$0xff]
    %v418 = vld [vmem:[#allocation5 + $0x844] sm:$0xff]
    %v419 = vld [vmem:[#allocation5 + $0x84c] sm:$0xf]
    %v420 = vld [vmem:[#allocation5 + $0x850] sm:$0xff]
    %v421 = vld [vmem:[#allocation5 + $0x858] sm:$0xff]
    %v422 = vld [vmem:[#allocation5 + $0x860] sm:$0xff]
    %v423 = vld [vmem:[#allocation5 + $0x868] sm:$0xf]
    %v424 = vld [vmem:[#allocation5 + $0x86c] sm:$0xff]
    %v425 = vld [vmem:[#allocation5 + $0x874] sm:$0xff]
    %v426 = vld [vmem:[#allocation5 + $0x87c] sm:$0xff]
    %v427 = vld [vmem:[#allocation5 + $0x884] sm:$0xf]
    %v428 = vld [vmem:[#allocation5 + $0x888] sm:$0xff]
    %v429 = vld [vmem:[#allocation5 + $0x890] sm:$0xff]
    %v430 = vld [vmem:[#allocation5 + $0x898] sm:$0xff]
    %v431 = vld [vmem:[#allocation5 + $0x8a0] sm:$0xf]
    %v432 = vld [vmem:[#allocation5 + $0x8a4] sm:$0xff]
    %v433 = vld [vmem:[#allocation5 + $0x8ac] sm:$0xff]
    %v434 = vld [vmem:[#allocation5 + $0x8b4] sm:$0xff]
    %v435 = vld [vmem:[#allocation5 + $0x8bc] sm:$0xf]
    %v436 = vld [vmem:[#allocation5 + $0x8c0] sm:$0xff]
    %v437 = vld [vmem:[#allocation5 + $0x8c8] sm:$0xff]
    %v438 = vld [vmem:[#allocation5 + $0x8d0] sm:$0xff]
    %v439 = vld [vmem:[#allocation5 + $0x8d8] sm:$0xf]
    %v440 = vld [vmem:[#allocation5 + $0x8dc] sm:$0xff]
    %v441 = vld [vmem:[#allocation5 + $0x8e4] sm:$0xff]
    %v442 = vld [vmem:[#allocation5 + $0x8ec] sm:$0xff]
    %v443 = vld [vmem:[#allocation5 + $0x8f4] sm:$0xf]
    %v444 = vld [vmem:[#allocation5 + $0x8f8] sm:$0xff]
    %v445 = vld [vmem:[#allocation5 + $0x900] sm:$0xff]
    %v446 = vld [vmem:[#allocation5 + $0x908] sm:$0xff]
    %v447 = vld [vmem:[#allocation5 + $0x910] sm:$0xf]
    %v448 = vld [vmem:[#allocation5 + $0x914] sm:$0xff]
    %v449 = vld [vmem:[#allocation5 + $0x91c] sm:$0xff]
    %v450 = vld [vmem:[#allocation5 + $0x924] sm:$0xff]
    %v451 = vld [vmem:[#allocation5 + $0x92c] sm:$0xf]
    %v452 = vld [vmem:[#allocation5 + $0x930] sm:$0xff]
    %v453 = vld [vmem:[#allocation5 + $0x938] sm:$0xff]
    %v454 = vld [vmem:[#allocation5 + $0x940] sm:$0xff]
    %v455 = vld [vmem:[#allocation5 + $0x948] sm:$0xf]
    %v456 = vld [vmem:[#allocation5 + $0x94c] sm:$0xff]
    %v457 = vld [vmem:[#allocation5 + $0x954] sm:$0xff]
    %v458 = vld [vmem:[#allocation5 + $0x95c] sm:$0xff]
    %v459 = vld [vmem:[#allocation5 + $0x964] sm:$0xf]
    %v460 = vld [vmem:[#allocation5 + $0x968] sm:$0xff]
    %v461 = vld [vmem:[#allocation5 + $0x970] sm:$0xff]
    %v462 = vld [vmem:[#allocation5 + $0x978] sm:$0xff]
    %v463 = vld [vmem:[#allocation5 + $0x980] sm:$0xf]
    %v464 = vld [vmem:[#allocation5 + $0x984] sm:$0xff]
    %v465 = vld [vmem:[#allocation5 + $0x98c] sm:$0xff]
    %v466 = vld [vmem:[#allocation5 + $0x994] sm:$0xff]
    %v467 = vld [vmem:[#allocation5 + $0x99c] sm:$0xf]
    %v468 = vld [vmem:[#allocation5 + $0x9a0] sm:$0xff]
    %v469 = vld [vmem:[#allocation5 + $0x9a8] sm:$0xff]
    %v470 = vld [vmem:[#allocation5 + $0x9b0] sm:$0xff]
    %v471 = vld [vmem:[#allocation5 + $0x9b8] sm:$0xf]
    %v472 = vld [vmem:[#allocation5 + $0x9bc] sm:$0xff]
    %v473 = vld [vmem:[#allocation5 + $0x9c4] sm:$0xff]
    %v474 = vld [vmem:[#allocation5 + $0x9cc] sm:$0xff]
    %v475 = vld [vmem:[#allocation5 + $0x9d4] sm:$0xf]
    %v476 = vld [vmem:[#allocation5 + $0x9d8] sm:$0xff]
    %v477 = vld [vmem:[#allocation5 + $0x9e0] sm:$0xff]
    %v478 = vld [vmem:[#allocation5 + $0x9e8] sm:$0xff]
    %v479 = vld [vmem:[#allocation5 + $0x9f0] sm:$0xf]
    %v480 = vld [vmem:[#allocation5 + $0x9f4] sm:$0xff]
    %v481 = vld [vmem:[#allocation5 + $0x9fc] sm:$0xff]
    %v482 = vld [vmem:[#allocation5 + $0xa04] sm:$0xff]
    %v483 = vld [vmem:[#allocation5 + $0xa0c] sm:$0xf]
    %v484 = vld [vmem:[#allocation5 + $0xa10] sm:$0xff]
    %v485 = vld [vmem:[#allocation5 + $0xa18] sm:$0xff]
    %v486 = vld [vmem:[#allocation5 + $0xa20] sm:$0xff]
    %v487 = vld [vmem:[#allocation5 + $0xa28] sm:$0xf]
    %v488 = vld [vmem:[#allocation5 + $0xa2c] sm:$0xff]
    %v489 = vld [vmem:[#allocation5 + $0xa34] sm:$0xff]
    %v490 = vld [vmem:[#allocation5 + $0xa3c] sm:$0xff]
    %v491 = vld [vmem:[#allocation5 + $0xa44] sm:$0xf]
    %v492 = vld [vmem:[#allocation5 + $0xa48] sm:$0xff]
    %v493 = vld [vmem:[#allocation5 + $0xa50] sm:$0xff]
    %v494 = vld [vmem:[#allocation5 + $0xa58] sm:$0xff]
    %v495 = vld [vmem:[#allocation5 + $0xa60] sm:$0xf]
    %v496 = vld [vmem:[#allocation5 + $0xa64] sm:$0xff]
    %v497 = vld [vmem:[#allocation5 + $0xa6c] sm:$0xff]
    %v498 = vld [vmem:[#allocation5 + $0xa74] sm:$0xff]
    %v499 = vld [vmem:[#allocation5 + $0xa7c] sm:$0xf]
    %v500 = vld [vmem:[#allocation5 + $0xa80] sm:$0xff]
    %v501 = vld [vmem:[#allocation5 + $0xa88] sm:$0xff]
    %v502 = vld [vmem:[#allocation5 + $0xa90] sm:$0xff]
    %v503 = vld [vmem:[#allocation5 + $0xa98] sm:$0xf]
    %v504 = vld [vmem:[#allocation5 + $0xa9c] sm:$0xff]
    %v505 = vld [vmem:[#allocation5 + $0xaa4] sm:$0xff]
    %v506 = vld [vmem:[#allocation5 + $0xaac] sm:$0xff]
    %v507 = vld [vmem:[#allocation5 + $0xab4] sm:$0xf]
    %v508 = vld [vmem:[#allocation7] sm:$0xff]
    %v510 = vlaneseq
    %v511 = vshrl.u32 %v510, 7
    %v512 = vsub.s32 0, %v511
    %v513 = vrot.slane %v508, %v512
    %v514 = vlaneseq
    %v515 = vshrl.u32 %v514, 7
    %v516 = vsub.s32 1, %v515
    %v517 = vrot.slane %v508, %v516
    %v518 = vlaneseq
    %v519 = vshrl.u32 %v518, 7
    %v520 = vsub.s32 2, %v519
    %v521 = vrot.slane %v508, %v520
    %v522 = vlaneseq
    %v523 = vshrl.u32 %v522, 7
    %v524 = vsub.s32 3, %v523
    %v525 = vrot.slane %v508, %v524
    %v526 = vlaneseq
    %v527 = vshrl.u32 %v526, 7
    %v528 = vsub.s32 4, %v527
    %v529 = vrot.slane %v508, %v528
    %v530 = vlaneseq
    %v531 = vshrl.u32 %v530, 7
    %v532 = vsub.s32 5, %v531
    %v533 = vrot.slane %v508, %v532
    %v534 = vlaneseq
    %v535 = vshrl.u32 %v534, 7
    %v536 = vsub.s32 6, %v535
    %v537 = vrot.slane %v508, %v536
    %v937 = vunpack.c.l.b16 %v116
    %v938 = vunpack.c.h.b16 %v116
    %v939 = vunpack.c.l.b16 %v117
    %v940 = vunpack.c.h.b16 %v117
    %v941 = vunpack.c.l.b16 %v118
    %v942 = vunpack.c.h.b16 %v118
    %v943 = vunpack.c.l.b16 %v119
    %v944 = vunpack.c.l.b16 %v120
    %v945 = vunpack.c.h.b16 %v120
    %v946 = vunpack.c.l.b16 %v121
    %v947 = vunpack.c.h.b16 %v121
    %v948 = vunpack.c.l.b16 %v122
    %v949 = vunpack.c.h.b16 %v122
    %v950 = vunpack.c.l.b16 %v123
    %v951 = vunpack.c.l.b16 %v124
    %v952 = vunpack.c.h.b16 %v124
    %v953 = vunpack.c.l.b16 %v125
    %v954 = vunpack.c.h.b16 %v125
    %v955 = vunpack.c.l.b16 %v126
    %v956 = vunpack.c.h.b16 %v126
    %v957 = vunpack.c.l.b16 %v127
    %v958 = vunpack.c.l.b16 %v128
    %v959 = vunpack.c.h.b16 %v128
    %v960 = vunpack.c.l.b16 %v129
    %v961 = vunpack.c.h.b16 %v129
    %v962 = vunpack.c.l.b16 %v130
    %v963 = vunpack.c.h.b16 %v130
    %v964 = vunpack.c.l.b16 %v131
    %v965 = vunpack.c.l.b16 %v132
    %v966 = vunpack.c.h.b16 %v132
    %v967 = vunpack.c.l.b16 %v133
    %v968 = vunpack.c.h.b16 %v133
    %v969 = vunpack.c.l.b16 %v134
    %v970 = vunpack.c.h.b16 %v134
    %v971 = vunpack.c.l.b16 %v135
    %v972 = vunpack.c.l.b16 %v136
    %v973 = vunpack.c.h.b16 %v136
    %v974 = vunpack.c.l.b16 %v137
    %v975 = vunpack.c.h.b16 %v137
    %v976 = vunpack.c.l.b16 %v138
    %v977 = vunpack.c.h.b16 %v138
    %v978 = vunpack.c.l.b16 %v139
    %v979 = vunpack.c.l.b16 %v140
    %v980 = vunpack.c.h.b16 %v140
    %v981 = vunpack.c.l.b16 %v141
    %v982 = vunpack.c.h.b16 %v141
    %v983 = vunpack.c.l.b16 %v142
    %v984 = vunpack.c.h.b16 %v142
    %v985 = vunpack.c.l.b16 %v143
    %v986 = vunpack.c.l.b16 %v144
    %v987 = vunpack.c.h.b16 %v144
    %v988 = vunpack.c.l.b16 %v145
    %v989 = vunpack.c.h.b16 %v145
    %v990 = vunpack.c.l.b16 %v146
    %v991 = vunpack.c.h.b16 %v146
    %v992 = vunpack.c.l.b16 %v147
    %v993 = vunpack.c.l.b16 %v148
    %v994 = vunpack.c.h.b16 %v148
    %v995 = vunpack.c.l.b16 %v149
    %v996 = vunpack.c.h.b16 %v149
    %v997 = vunpack.c.l.b16 %v150
    %v998 = vunpack.c.h.b16 %v150
    %v999 = vunpack.c.l.b16 %v151
    %v1000 = vunpack.c.l.b16 %v152
    %v1001 = vunpack.c.h.b16 %v152
    %v1002 = vunpack.c.l.b16 %v153
    %v1003 = vunpack.c.h.b16 %v153
    %v1004 = vunpack.c.l.b16 %v154
    %v1005 = vunpack.c.h.b16 %v154
    %v1006 = vunpack.c.l.b16 %v155
    %v1007 = vunpack.c.l.b16 %v156
    %v1008 = vunpack.c.h.b16 %v156
    %v1009 = vunpack.c.l.b16 %v157
    %v1010 = vunpack.c.h.b16 %v157
    %v1011 = vunpack.c.l.b16 %v158
    %v1012 = vunpack.c.h.b16 %v158
    %v1013 = vunpack.c.l.b16 %v159
    %v1014 = vunpack.c.l.b16 %v160
    %v1015 = vunpack.c.h.b16 %v160
    %v1016 = vunpack.c.l.b16 %v161
    %v1017 = vunpack.c.h.b16 %v161
    %v1018 = vunpack.c.l.b16 %v162
    %v1019 = vunpack.c.h.b16 %v162
    %v1020 = vunpack.c.l.b16 %v163
    %v1021 = vunpack.c.l.b16 %v164
    %v1022 = vunpack.c.h.b16 %v164
    %v1023 = vunpack.c.l.b16 %v165
    %v1024 = vunpack.c.h.b16 %v165
    %v1025 = vunpack.c.l.b16 %v166
    %v1026 = vunpack.c.h.b16 %v166
    %v1027 = vunpack.c.l.b16 %v167
    %v1028 = vunpack.c.l.b16 %v168
    %v1029 = vunpack.c.h.b16 %v168
    %v1030 = vunpack.c.l.b16 %v169
    %v1031 = vunpack.c.h.b16 %v169
    %v1032 = vunpack.c.l.b16 %v170
    %v1033 = vunpack.c.h.b16 %v170
    %v1034 = vunpack.c.l.b16 %v171
    %v1035 = vunpack.c.l.b16 %v172
    %v1036 = vunpack.c.h.b16 %v172
    %v1037 = vunpack.c.l.b16 %v173
    %v1038 = vunpack.c.h.b16 %v173
    %v1039 = vunpack.c.l.b16 %v174
    %v1040 = vunpack.c.h.b16 %v174
    %v1041 = vunpack.c.l.b16 %v175
    %v1042 = vunpack.c.l.b16 %v176
    %v1043 = vunpack.c.h.b16 %v176
    %v1044 = vunpack.c.l.b16 %v177
    %v1045 = vunpack.c.h.b16 %v177
    %v1046 = vunpack.c.l.b16 %v178
    %v1047 = vunpack.c.h.b16 %v178
    %v1048 = vunpack.c.l.b16 %v179
    %v1049 = vunpack.c.l.b16 %v180
    %v1050 = vunpack.c.h.b16 %v180
    %v1051 = vunpack.c.l.b16 %v181
    %v1052 = vunpack.c.h.b16 %v181
    %v1053 = vunpack.c.l.b16 %v182
    %v1054 = vunpack.c.h.b16 %v182
    %v1055 = vunpack.c.l.b16 %v183
    %v1056 = vunpack.c.l.b16 %v184
    %v1057 = vunpack.c.h.b16 %v184
    %v1058 = vunpack.c.l.b16 %v185
    %v1059 = vunpack.c.h.b16 %v185
    %v1060 = vunpack.c.l.b16 %v186
    %v1061 = vunpack.c.h.b16 %v186
    %v1062 = vunpack.c.l.b16 %v187
    %v1063 = vunpack.c.l.b16 %v188
    %v1064 = vunpack.c.h.b16 %v188
    %v1065 = vunpack.c.l.b16 %v189
    %v1066 = vunpack.c.h.b16 %v189
    %v1067 = vunpack.c.l.b16 %v190
    %v1068 = vunpack.c.h.b16 %v190
    %v1069 = vunpack.c.l.b16 %v191
    %v1070 = vunpack.c.l.b16 %v192
    %v1071 = vunpack.c.h.b16 %v192
    %v1072 = vunpack.c.l.b16 %v193
    %v1073 = vunpack.c.h.b16 %v193
    %v1074 = vunpack.c.l.b16 %v194
    %v1075 = vunpack.c.h.b16 %v194
    %v1076 = vunpack.c.l.b16 %v195
    %v1077 = vunpack.c.l.b16 %v196
    %v1078 = vunpack.c.h.b16 %v196
    %v1079 = vunpack.c.l.b16 %v197
    %v1080 = vunpack.c.h.b16 %v197
    %v1081 = vunpack.c.l.b16 %v198
    %v1082 = vunpack.c.h.b16 %v198
    %v1083 = vunpack.c.l.b16 %v199
    %v1084 = vunpack.c.l.b16 %v200
    %v1085 = vunpack.c.h.b16 %v200
    %v1086 = vunpack.c.l.b16 %v201
    %v1087 = vunpack.c.h.b16 %v201
    %v1088 = vunpack.c.l.b16 %v202
    %v1089 = vunpack.c.h.b16 %v202
    %v1090 = vunpack.c.l.b16 %v203
    %v1091 = vunpack.c.l.b16 %v204
    %v1092 = vunpack.c.h.b16 %v204
    %v1093 = vunpack.c.l.b16 %v205
    %v1094 = vunpack.c.h.b16 %v205
    %v1095 = vunpack.c.l.b16 %v206
    %v1096 = vunpack.c.h.b16 %v206
    %v1097 = vunpack.c.l.b16 %v207
    %v1098 = vunpack.c.l.b16 %v208
    %v1099 = vunpack.c.h.b16 %v208
    %v1100 = vunpack.c.l.b16 %v209
    %v1101 = vunpack.c.h.b16 %v209
    %v1102 = vunpack.c.l.b16 %v210
    %v1103 = vunpack.c.h.b16 %v210
    %v1104 = vunpack.c.l.b16 %v211
    %v1105 = vunpack.c.l.b16 %v212
    %v1106 = vunpack.c.h.b16 %v212
    %v1107 = vunpack.c.l.b16 %v213
    %v1108 = vunpack.c.h.b16 %v213
    %v1109 = vunpack.c.l.b16 %v214
    %v1110 = vunpack.c.h.b16 %v214
    %v1111 = vunpack.c.l.b16 %v215
    %v1112 = vunpack.c.l.b16 %v216
    %v1113 = vunpack.c.h.b16 %v216
    %v1114 = vunpack.c.l.b16 %v217
    %v1115 = vunpack.c.h.b16 %v217
    %v1116 = vunpack.c.l.b16 %v218
    %v1117 = vunpack.c.h.b16 %v218
    %v1118 = vunpack.c.l.b16 %v219
    %v1119 = vunpack.c.l.b16 %v220
    %v1120 = vunpack.c.h.b16 %v220
    %v1121 = vunpack.c.l.b16 %v221
    %v1122 = vunpack.c.h.b16 %v221
    %v1123 = vunpack.c.l.b16 %v222
    %v1124 = vunpack.c.h.b16 %v222
    %v1125 = vunpack.c.l.b16 %v223
    %v1126 = vunpack.c.l.b16 %v224
    %v1127 = vunpack.c.h.b16 %v224
    %v1128 = vunpack.c.l.b16 %v225
    %v1129 = vunpack.c.h.b16 %v225
    %v1130 = vunpack.c.l.b16 %v226
    %v1131 = vunpack.c.h.b16 %v226
    %v1132 = vunpack.c.l.b16 %v227
    %v1133 = vunpack.c.l.b16 %v228
    %v1134 = vunpack.c.h.b16 %v228
    %v1135 = vunpack.c.l.b16 %v229
    %v1136 = vunpack.c.h.b16 %v229
    %v1137 = vunpack.c.l.b16 %v230
    %v1138 = vunpack.c.h.b16 %v230
    %v1139 = vunpack.c.l.b16 %v231
    %v1140 = vunpack.c.l.b16 %v232
    %v1141 = vunpack.c.h.b16 %v232
    %v1142 = vunpack.c.l.b16 %v233
    %v1143 = vunpack.c.h.b16 %v233
    %v1144 = vunpack.c.l.b16 %v234
    %v1145 = vunpack.c.h.b16 %v234
    %v1146 = vunpack.c.l.b16 %v235
    %v1147 = vunpack.c.l.b16 %v236
    %v1148 = vunpack.c.h.b16 %v236
    %v1149 = vunpack.c.l.b16 %v237
    %v1150 = vunpack.c.h.b16 %v237
    %v1151 = vunpack.c.l.b16 %v238
    %v1152 = vunpack.c.h.b16 %v238
    %v1153 = vunpack.c.l.b16 %v239
    %v1154 = vunpack.c.l.b16 %v240
    %v1155 = vunpack.c.h.b16 %v240
    %v1156 = vunpack.c.l.b16 %v241
    %v1157 = vunpack.c.h.b16 %v241
    %v1158 = vunpack.c.l.b16 %v242
    %v1159 = vunpack.c.h.b16 %v242
    %v1160 = vunpack.c.l.b16 %v243
    %v1161 = vunpack.c.l.b16 %v244
    %v1162 = vunpack.c.h.b16 %v244
    %v1163 = vunpack.c.l.b16 %v245
    %v1164 = vunpack.c.h.b16 %v245
    %v1165 = vunpack.c.l.b16 %v246
    %v1166 = vunpack.c.h.b16 %v246
    %v1167 = vunpack.c.l.b16 %v247
    %v1168 = vunpack.c.l.b16 %v248
    %v1169 = vunpack.c.h.b16 %v248
    %v1170 = vunpack.c.l.b16 %v249
    %v1171 = vunpack.c.h.b16 %v249
    %v1172 = vunpack.c.l.b16 %v250
    %v1173 = vunpack.c.h.b16 %v250
    %v1174 = vunpack.c.l.b16 %v251
    %v1175 = vunpack.c.l.b16 %v252
    %v1176 = vunpack.c.h.b16 %v252
    %v1177 = vunpack.c.l.b16 %v253
    %v1178 = vunpack.c.h.b16 %v253
    %v1179 = vunpack.c.l.b16 %v254
    %v1180 = vunpack.c.h.b16 %v254
    %v1181 = vunpack.c.l.b16 %v255
    %v1182 = vunpack.c.l.b16 %v256
    %v1183 = vunpack.c.h.b16 %v256
    %v1184 = vunpack.c.l.b16 %v257
    %v1185 = vunpack.c.h.b16 %v257
    %v1186 = vunpack.c.l.b16 %v258
    %v1187 = vunpack.c.h.b16 %v258
    %v1188 = vunpack.c.l.b16 %v259
    %v1189 = vunpack.c.l.b16 %v260
    %v1190 = vunpack.c.h.b16 %v260
    %v1191 = vunpack.c.l.b16 %v261
    %v1192 = vunpack.c.h.b16 %v261
    %v1193 = vunpack.c.l.b16 %v262
    %v1194 = vunpack.c.h.b16 %v262
    %v1195 = vunpack.c.l.b16 %v263
    %v1196 = vunpack.c.l.b16 %v264
    %v1197 = vunpack.c.h.b16 %v264
    %v1198 = vunpack.c.l.b16 %v265
    %v1199 = vunpack.c.h.b16 %v265
    %v1200 = vunpack.c.l.b16 %v266
    %v1201 = vunpack.c.h.b16 %v266
    %v1202 = vunpack.c.l.b16 %v267
    %v1203 = vunpack.c.l.b16 %v268
    %v1204 = vunpack.c.h.b16 %v268
    %v1205 = vunpack.c.l.b16 %v269
    %v1206 = vunpack.c.h.b16 %v269
    %v1207 = vunpack.c.l.b16 %v270
    %v1208 = vunpack.c.h.b16 %v270
    %v1209 = vunpack.c.l.b16 %v271
    %v1210 = vunpack.c.l.b16 %v272
    %v1211 = vunpack.c.h.b16 %v272
    %v1212 = vunpack.c.l.b16 %v273
    %v1213 = vunpack.c.h.b16 %v273
    %v1214 = vunpack.c.l.b16 %v274
    %v1215 = vunpack.c.h.b16 %v274
    %v1216 = vunpack.c.l.b16 %v275
    %v1217 = vunpack.c.l.b16 %v276
    %v1218 = vunpack.c.h.b16 %v276
    %v1219 = vunpack.c.l.b16 %v277
    %v1220 = vunpack.c.h.b16 %v277
    %v1221 = vunpack.c.l.b16 %v278
    %v1222 = vunpack.c.h.b16 %v278
    %v1223 = vunpack.c.l.b16 %v279
    %v1224 = vunpack.c.l.b16 %v280
    %v1225 = vunpack.c.h.b16 %v280
    %v1226 = vunpack.c.l.b16 %v281
    %v1227 = vunpack.c.h.b16 %v281
    %v1228 = vunpack.c.l.b16 %v282
    %v1229 = vunpack.c.h.b16 %v282
    %v1230 = vunpack.c.l.b16 %v283
    %v1231 = vunpack.c.l.b16 %v284
    %v1232 = vunpack.c.h.b16 %v284
    %v1233 = vunpack.c.l.b16 %v285
    %v1234 = vunpack.c.h.b16 %v285
    %v1235 = vunpack.c.l.b16 %v286
    %v1236 = vunpack.c.h.b16 %v286
    %v1237 = vunpack.c.l.b16 %v287
    %v1238 = vunpack.c.l.b16 %v288
    %v1239 = vunpack.c.h.b16 %v288
    %v1240 = vunpack.c.l.b16 %v289
    %v1241 = vunpack.c.h.b16 %v289
    %v1242 = vunpack.c.l.b16 %v290
    %v1243 = vunpack.c.h.b16 %v290
    %v1244 = vunpack.c.l.b16 %v291
    %v1245 = vunpack.c.l.b16 %v292
    %v1246 = vunpack.c.h.b16 %v292
    %v1247 = vunpack.c.l.b16 %v293
    %v1248 = vunpack.c.h.b16 %v293
    %v1249 = vunpack.c.l.b16 %v294
    %v1250 = vunpack.c.h.b16 %v294
    %v1251 = vunpack.c.l.b16 %v295
    %v1252 = vunpack.c.l.b16 %v296
    %v1253 = vunpack.c.h.b16 %v296
    %v1254 = vunpack.c.l.b16 %v297
    %v1255 = vunpack.c.h.b16 %v297
    %v1256 = vunpack.c.l.b16 %v298
    %v1257 = vunpack.c.h.b16 %v298
    %v1258 = vunpack.c.l.b16 %v299
    %v1259 = vunpack.c.l.b16 %v300
    %v1260 = vunpack.c.h.b16 %v300
    %v1261 = vunpack.c.l.b16 %v301
    %v1262 = vunpack.c.h.b16 %v301
    %v1263 = vunpack.c.l.b16 %v302
    %v1264 = vunpack.c.h.b16 %v302
    %v1265 = vunpack.c.l.b16 %v303
    %v1266 = vunpack.c.l.b16 %v304
    %v1267 = vunpack.c.h.b16 %v304
    %v1268 = vunpack.c.l.b16 %v305
    %v1269 = vunpack.c.h.b16 %v305
    %v1270 = vunpack.c.l.b16 %v306
    %v1271 = vunpack.c.h.b16 %v306
    %v1272 = vunpack.c.l.b16 %v307
    %v1273 = vunpack.c.l.b16 %v308
    %v1274 = vunpack.c.h.b16 %v308
    %v1275 = vunpack.c.l.b16 %v309
    %v1276 = vunpack.c.h.b16 %v309
    %v1277 = vunpack.c.l.b16 %v310
    %v1278 = vunpack.c.h.b16 %v310
    %v1279 = vunpack.c.l.b16 %v311
    %v1280 = vunpack.c.l.b16 %v312
    %v1281 = vunpack.c.h.b16 %v312
    %v1282 = vunpack.c.l.b16 %v313
    %v1283 = vunpack.c.h.b16 %v313
    %v1284 = vunpack.c.l.b16 %v314
    %v1285 = vunpack.c.h.b16 %v314
    %v1286 = vunpack.c.l.b16 %v315
    %v1287 = vunpack.c.l.b16 %v316
    %v1288 = vunpack.c.h.b16 %v316
    %v1289 = vunpack.c.l.b16 %v317
    %v1290 = vunpack.c.h.b16 %v317
    %v1291 = vunpack.c.l.b16 %v318
    %v1292 = vunpack.c.h.b16 %v318
    %v1293 = vunpack.c.l.b16 %v319
    %v1294 = vunpack.c.l.b16 %v320
    %v1295 = vunpack.c.h.b16 %v320
    %v1296 = vunpack.c.l.b16 %v321
    %v1297 = vunpack.c.h.b16 %v321
    %v1298 = vunpack.c.l.b16 %v322
    %v1299 = vunpack.c.h.b16 %v322
    %v1300 = vunpack.c.l.b16 %v323
    %v1301 = vunpack.c.l.b16 %v324
    %v1302 = vunpack.c.h.b16 %v324
    %v1303 = vunpack.c.l.b16 %v325
    %v1304 = vunpack.c.h.b16 %v325
    %v1305 = vunpack.c.l.b16 %v326
    %v1306 = vunpack.c.h.b16 %v326
    %v1307 = vunpack.c.l.b16 %v327
    %v1308 = vunpack.c.l.b16 %v328
    %v1309 = vunpack.c.h.b16 %v328
    %v1310 = vunpack.c.l.b16 %v329
    %v1311 = vunpack.c.h.b16 %v329
    %v1312 = vunpack.c.l.b16 %v330
    %v1313 = vunpack.c.h.b16 %v330
    %v1314 = vunpack.c.l.b16 %v331
    %v1315 = vunpack.c.l.b16 %v332
    %v1316 = vunpack.c.h.b16 %v332
    %v1317 = vunpack.c.l.b16 %v333
    %v1318 = vunpack.c.h.b16 %v333
    %v1319 = vunpack.c.l.b16 %v334
    %v1320 = vunpack.c.h.b16 %v334
    %v1321 = vunpack.c.l.b16 %v335
    %v1322 = vunpack.c.l.b16 %v336
    %v1323 = vunpack.c.h.b16 %v336
    %v1324 = vunpack.c.l.b16 %v337
    %v1325 = vunpack.c.h.b16 %v337
    %v1326 = vunpack.c.l.b16 %v338
    %v1327 = vunpack.c.h.b16 %v338
    %v1328 = vunpack.c.l.b16 %v339
    %v1329 = vunpack.c.l.b16 %v340
    %v1330 = vunpack.c.h.b16 %v340
    %v1331 = vunpack.c.l.b16 %v341
    %v1332 = vunpack.c.h.b16 %v341
    %v1333 = vunpack.c.l.b16 %v342
    %v1334 = vunpack.c.h.b16 %v342
    %v1335 = vunpack.c.l.b16 %v343
    %v1336 = vunpack.c.l.b16 %v344
    %v1337 = vunpack.c.h.b16 %v344
    %v1338 = vunpack.c.l.b16 %v345
    %v1339 = vunpack.c.h.b16 %v345
    %v1340 = vunpack.c.l.b16 %v346
    %v1341 = vunpack.c.h.b16 %v346
    %v1342 = vunpack.c.l.b16 %v347
    %v1343 = vunpack.c.l.b16 %v348
    %v1344 = vunpack.c.h.b16 %v348
    %v1345 = vunpack.c.l.b16 %v349
    %v1346 = vunpack.c.h.b16 %v349
    %v1347 = vunpack.c.l.b16 %v350
    %v1348 = vunpack.c.h.b16 %v350
    %v1349 = vunpack.c.l.b16 %v351
    %v1350 = vunpack.c.l.b16 %v352
    %v1351 = vunpack.c.h.b16 %v352
    %v1352 = vunpack.c.l.b16 %v353
    %v1353 = vunpack.c.h.b16 %v353
    %v1354 = vunpack.c.l.b16 %v354
    %v1355 = vunpack.c.h.b16 %v354
    %v1356 = vunpack.c.l.b16 %v355
    %v1357 = vunpack.c.l.b16 %v356
    %v1358 = vunpack.c.h.b16 %v356
    %v1359 = vunpack.c.l.b16 %v357
    %v1360 = vunpack.c.h.b16 %v357
    %v1361 = vunpack.c.l.b16 %v358
    %v1362 = vunpack.c.h.b16 %v358
    %v1363 = vunpack.c.l.b16 %v359
    %v1364 = vunpack.c.l.b16 %v360
    %v1365 = vunpack.c.h.b16 %v360
    %v1366 = vunpack.c.l.b16 %v361
    %v1367 = vunpack.c.h.b16 %v361
    %v1368 = vunpack.c.l.b16 %v362
    %v1369 = vunpack.c.h.b16 %v362
    %v1370 = vunpack.c.l.b16 %v363
    %v1371 = vunpack.c.l.b16 %v364
    %v1372 = vunpack.c.h.b16 %v364
    %v1373 = vunpack.c.l.b16 %v365
    %v1374 = vunpack.c.h.b16 %v365
    %v1375 = vunpack.c.l.b16 %v366
    %v1376 = vunpack.c.h.b16 %v366
    %v1377 = vunpack.c.l.b16 %v367
    %v1378 = vunpack.c.l.b16 %v368
    %v1379 = vunpack.c.h.b16 %v368
    %v1380 = vunpack.c.l.b16 %v369
    %v1381 = vunpack.c.h.b16 %v369
    %v1382 = vunpack.c.l.b16 %v370
    %v1383 = vunpack.c.h.b16 %v370
    %v1384 = vunpack.c.l.b16 %v371
    %v1385 = vunpack.c.l.b16 %v372
    %v1386 = vunpack.c.h.b16 %v372
    %v1387 = vunpack.c.l.b16 %v373
    %v1388 = vunpack.c.h.b16 %v373
    %v1389 = vunpack.c.l.b16 %v374
    %v1390 = vunpack.c.h.b16 %v374
    %v1391 = vunpack.c.l.b16 %v375
    %v1392 = vunpack.c.l.b16 %v376
    %v1393 = vunpack.c.h.b16 %v376
    %v1394 = vunpack.c.l.b16 %v377
    %v1395 = vunpack.c.h.b16 %v377
    %v1396 = vunpack.c.l.b16 %v378
    %v1397 = vunpack.c.h.b16 %v378
    %v1398 = vunpack.c.l.b16 %v379
    %v1399 = vunpack.c.l.b16 %v380
    %v1400 = vunpack.c.h.b16 %v380
    %v1401 = vunpack.c.l.b16 %v381
    %v1402 = vunpack.c.h.b16 %v381
    %v1403 = vunpack.c.l.b16 %v382
    %v1404 = vunpack.c.h.b16 %v382
    %v1405 = vunpack.c.l.b16 %v383
    %v1406 = vunpack.c.l.b16 %v384
    %v1407 = vunpack.c.h.b16 %v384
    %v1408 = vunpack.c.l.b16 %v385
    %v1409 = vunpack.c.h.b16 %v385
    %v1410 = vunpack.c.l.b16 %v386
    %v1411 = vunpack.c.h.b16 %v386
    %v1412 = vunpack.c.l.b16 %v387
    %v1413 = vunpack.c.l.b16 %v388
    %v1414 = vunpack.c.h.b16 %v388
    %v1415 = vunpack.c.l.b16 %v389
    %v1416 = vunpack.c.h.b16 %v389
    %v1417 = vunpack.c.l.b16 %v390
    %v1418 = vunpack.c.h.b16 %v390
    %v1419 = vunpack.c.l.b16 %v391
    %v1420 = vunpack.c.l.b16 %v392
    %v1421 = vunpack.c.h.b16 %v392
    %v1422 = vunpack.c.l.b16 %v393
    %v1423 = vunpack.c.h.b16 %v393
    %v1424 = vunpack.c.l.b16 %v394
    %v1425 = vunpack.c.h.b16 %v394
    %v1426 = vunpack.c.l.b16 %v395
    %v1427 = vunpack.c.l.b16 %v396
    %v1428 = vunpack.c.h.b16 %v396
    %v1429 = vunpack.c.l.b16 %v397
    %v1430 = vunpack.c.h.b16 %v397
    %v1431 = vunpack.c.l.b16 %v398
    %v1432 = vunpack.c.h.b16 %v398
    %v1433 = vunpack.c.l.b16 %v399
    %v1434 = vunpack.c.l.b16 %v400
    %v1435 = vunpack.c.h.b16 %v400
    %v1436 = vunpack.c.l.b16 %v401
    %v1437 = vunpack.c.h.b16 %v401
    %v1438 = vunpack.c.l.b16 %v402
    %v1439 = vunpack.c.h.b16 %v402
    %v1440 = vunpack.c.l.b16 %v403
    %v1441 = vunpack.c.l.b16 %v404
    %v1442 = vunpack.c.h.b16 %v404
    %v1443 = vunpack.c.l.b16 %v405
    %v1444 = vunpack.c.h.b16 %v405
    %v1445 = vunpack.c.l.b16 %v406
    %v1446 = vunpack.c.h.b16 %v406
    %v1447 = vunpack.c.l.b16 %v407
    %v1448 = vunpack.c.l.b16 %v408
    %v1449 = vunpack.c.h.b16 %v408
    %v1450 = vunpack.c.l.b16 %v409
    %v1451 = vunpack.c.h.b16 %v409
    %v1452 = vunpack.c.l.b16 %v410
    %v1453 = vunpack.c.h.b16 %v410
    %v1454 = vunpack.c.l.b16 %v411
    %v1455 = vunpack.c.l.b16 %v412
    %v1456 = vunpack.c.h.b16 %v412
    %v1457 = vunpack.c.l.b16 %v413
    %v1458 = vunpack.c.h.b16 %v413
    %v1459 = vunpack.c.l.b16 %v414
    %v1460 = vunpack.c.h.b16 %v414
    %v1461 = vunpack.c.l.b16 %v415
    %v1462 = vunpack.c.l.b16 %v416
    %v1463 = vunpack.c.h.b16 %v416
    %v1464 = vunpack.c.l.b16 %v417
    %v1465 = vunpack.c.h.b16 %v417
    %v1466 = vunpack.c.l.b16 %v418
    %v1467 = vunpack.c.h.b16 %v418
    %v1468 = vunpack.c.l.b16 %v419
    %v1469 = vunpack.c.l.b16 %v420
    %v1470 = vunpack.c.h.b16 %v420
    %v1471 = vunpack.c.l.b16 %v421
    %v1472 = vunpack.c.h.b16 %v421
    %v1473 = vunpack.c.l.b16 %v422
    %v1474 = vunpack.c.h.b16 %v422
    %v1475 = vunpack.c.l.b16 %v423
    %v1476 = vunpack.c.l.b16 %v424
    %v1477 = vunpack.c.h.b16 %v424
    %v1478 = vunpack.c.l.b16 %v425
    %v1479 = vunpack.c.h.b16 %v425
    %v1480 = vunpack.c.l.b16 %v426
    %v1481 = vunpack.c.h.b16 %v426
    %v1482 = vunpack.c.l.b16 %v427
    %v1483 = vunpack.c.l.b16 %v428
    %v1484 = vunpack.c.h.b16 %v428
    %v1485 = vunpack.c.l.b16 %v429
    %v1486 = vunpack.c.h.b16 %v429
    %v1487 = vunpack.c.l.b16 %v430
    %v1488 = vunpack.c.h.b16 %v430
    %v1489 = vunpack.c.l.b16 %v431
    %v1490 = vunpack.c.l.b16 %v432
    %v1491 = vunpack.c.h.b16 %v432
    %v1492 = vunpack.c.l.b16 %v433
    %v1493 = vunpack.c.h.b16 %v433
    %v1494 = vunpack.c.l.b16 %v434
    %v1495 = vunpack.c.h.b16 %v434
    %v1496 = vunpack.c.l.b16 %v435
    %v1497 = vunpack.c.l.b16 %v436
    %v1498 = vunpack.c.h.b16 %v436
    %v1499 = vunpack.c.l.b16 %v437
    %v1500 = vunpack.c.h.b16 %v437
    %v1501 = vunpack.c.l.b16 %v438
    %v1502 = vunpack.c.h.b16 %v438
    %v1503 = vunpack.c.l.b16 %v439
    %v1504 = vunpack.c.l.b16 %v440
    %v1505 = vunpack.c.h.b16 %v440
    %v1506 = vunpack.c.l.b16 %v441
    %v1507 = vunpack.c.h.b16 %v441
    %v1508 = vunpack.c.l.b16 %v442
    %v1509 = vunpack.c.h.b16 %v442
    %v1510 = vunpack.c.l.b16 %v443
    %v1511 = vunpack.c.l.b16 %v444
    %v1512 = vunpack.c.h.b16 %v444
    %v1513 = vunpack.c.l.b16 %v445
    %v1514 = vunpack.c.h.b16 %v445
    %v1515 = vunpack.c.l.b16 %v446
    %v1516 = vunpack.c.h.b16 %v446
    %v1517 = vunpack.c.l.b16 %v447
    %v1518 = vunpack.c.l.b16 %v448
    %v1519 = vunpack.c.h.b16 %v448
    %v1520 = vunpack.c.l.b16 %v449
    %v1521 = vunpack.c.h.b16 %v449
    %v1522 = vunpack.c.l.b16 %v450
    %v1523 = vunpack.c.h.b16 %v450
    %v1524 = vunpack.c.l.b16 %v451
    %v1525 = vunpack.c.l.b16 %v452
    %v1526 = vunpack.c.h.b16 %v452
    %v1527 = vunpack.c.l.b16 %v453
    %v1528 = vunpack.c.h.b16 %v453
    %v1529 = vunpack.c.l.b16 %v454
    %v1530 = vunpack.c.h.b16 %v454
    %v1531 = vunpack.c.l.b16 %v455
    %v1532 = vunpack.c.l.b16 %v456
    %v1533 = vunpack.c.h.b16 %v456
    %v1534 = vunpack.c.l.b16 %v457
    %v1535 = vunpack.c.h.b16 %v457
    %v1536 = vunpack.c.l.b16 %v458
    %v1537 = vunpack.c.h.b16 %v458
    %v1538 = vunpack.c.l.b16 %v459
    %v1539 = vunpack.c.l.b16 %v460
    %v1540 = vunpack.c.h.b16 %v460
    %v1541 = vunpack.c.l.b16 %v461
    %v1542 = vunpack.c.h.b16 %v461
    %v1543 = vunpack.c.l.b16 %v462
    %v1544 = vunpack.c.h.b16 %v462
    %v1545 = vunpack.c.l.b16 %v463
    %v1546 = vunpack.c.l.b16 %v464
    %v1547 = vunpack.c.h.b16 %v464
    %v1548 = vunpack.c.l.b16 %v465
    %v1549 = vunpack.c.h.b16 %v465
    %v1550 = vunpack.c.l.b16 %v466
    %v1551 = vunpack.c.h.b16 %v466
    %v1552 = vunpack.c.l.b16 %v467
    %v1553 = vunpack.c.l.b16 %v468
    %v1554 = vunpack.c.h.b16 %v468
    %v1555 = vunpack.c.l.b16 %v469
    %v1556 = vunpack.c.h.b16 %v469
    %v1557 = vunpack.c.l.b16 %v470
    %v1558 = vunpack.c.h.b16 %v470
    %v1559 = vunpack.c.l.b16 %v471
    %v1560 = vunpack.c.l.b16 %v472
    %v1561 = vunpack.c.h.b16 %v472
    %v1562 = vunpack.c.l.b16 %v473
    %v1563 = vunpack.c.h.b16 %v473
    %v1564 = vunpack.c.l.b16 %v474
    %v1565 = vunpack.c.h.b16 %v474
    %v1566 = vunpack.c.l.b16 %v475
    %v1567 = vunpack.c.l.b16 %v476
    %v1568 = vunpack.c.h.b16 %v476
    %v1569 = vunpack.c.l.b16 %v477
    %v1570 = vunpack.c.h.b16 %v477
    %v1571 = vunpack.c.l.b16 %v478
    %v1572 = vunpack.c.h.b16 %v478
    %v1573 = vunpack.c.l.b16 %v479
    %v1574 = vunpack.c.l.b16 %v480
    %v1575 = vunpack.c.h.b16 %v480
    %v1576 = vunpack.c.l.b16 %v481
    %v1577 = vunpack.c.h.b16 %v481
    %v1578 = vunpack.c.l.b16 %v482
    %v1579 = vunpack.c.h.b16 %v482
    %v1580 = vunpack.c.l.b16 %v483
    %v1581 = vunpack.c.l.b16 %v484
    %v1582 = vunpack.c.h.b16 %v484
    %v1583 = vunpack.c.l.b16 %v485
    %v1584 = vunpack.c.h.b16 %v485
    %v1585 = vunpack.c.l.b16 %v486
    %v1586 = vunpack.c.h.b16 %v486
    %v1587 = vunpack.c.l.b16 %v487
    %v1588 = vunpack.c.l.b16 %v488
    %v1589 = vunpack.c.h.b16 %v488
    %v1590 = vunpack.c.l.b16 %v489
    %v1591 = vunpack.c.h.b16 %v489
    %v1592 = vunpack.c.l.b16 %v490
    %v1593 = vunpack.c.h.b16 %v490
    %v1594 = vunpack.c.l.b16 %v491
    %v1595 = vunpack.c.l.b16 %v492
    %v1596 = vunpack.c.h.b16 %v492
    %v1597 = vunpack.c.l.b16 %v493
    %v1598 = vunpack.c.h.b16 %v493
    %v1599 = vunpack.c.l.b16 %v494
    %v1600 = vunpack.c.h.b16 %v494
    %v1601 = vunpack.c.l.b16 %v495
    %v1602 = vunpack.c.l.b16 %v496
    %v1603 = vunpack.c.h.b16 %v496
    %v1604 = vunpack.c.l.b16 %v497
    %v1605 = vunpack.c.h.b16 %v497
    %v1606 = vunpack.c.l.b16 %v498
    %v1607 = vunpack.c.h.b16 %v498
    %v1608 = vunpack.c.l.b16 %v499
    %v1609 = vunpack.c.l.b16 %v500
    %v1610 = vunpack.c.h.b16 %v500
    %v1611 = vunpack.c.l.b16 %v501
    %v1612 = vunpack.c.h.b16 %v501
    %v1613 = vunpack.c.l.b16 %v502
    %v1614 = vunpack.c.h.b16 %v502
    %v1615 = vunpack.c.l.b16 %v503
    %v1616 = vunpack.c.l.b16 %v504
    %v1617 = vunpack.c.h.b16 %v504
    %v1618 = vunpack.c.l.b16 %v505
    %v1619 = vunpack.c.h.b16 %v505
    %v1620 = vunpack.c.l.b16 %v506
    %v1621 = vunpack.c.h.b16 %v506
    %v1622 = vunpack.c.l.b16 %v507
    %v1623 = vpack.c.b16 %v944, %v937
    %v1624 = vpack.c.b16 %v945, %v938
    %v1625 = vpack.c.b16 %v946, %v939
    %v1626 = vpack.c.b16 %v947, %v940
    %v1627 = vpack.c.b16 %v948, %v941
    %v1628 = vpack.c.b16 %v949, %v942
    %v1629 = vpack.c.b16 %v950, %v943
    %v1630 = vpack.c.b16 %v958, %v951
    %v1631 = vpack.c.b16 %v959, %v952
    %v1632 = vpack.c.b16 %v960, %v953
    %v1633 = vpack.c.b16 %v961, %v954
    %v1634 = vpack.c.b16 %v962, %v955
    %v1635 = vpack.c.b16 %v963, %v956
    %v1636 = vpack.c.b16 %v964, %v957
    %v1637 = vpack.c.b16 %v972, %v965
    %v1638 = vpack.c.b16 %v973, %v966
    %v1639 = vpack.c.b16 %v974, %v967
    %v1640 = vpack.c.b16 %v975, %v968
    %v1641 = vpack.c.b16 %v976, %v969
    %v1642 = vpack.c.b16 %v977, %v970
    %v1643 = vpack.c.b16 %v978, %v971
    %v1644 = vpack.c.b16 %v986, %v979
    %v1645 = vpack.c.b16 %v987, %v980
    %v1646 = vpack.c.b16 %v988, %v981
    %v1647 = vpack.c.b16 %v989, %v982
    %v1648 = vpack.c.b16 %v990, %v983
    %v1649 = vpack.c.b16 %v991, %v984
    %v1650 = vpack.c.b16 %v992, %v985
    %v1651 = vpack.c.b16 %v1000, %v993
    %v1652 = vpack.c.b16 %v1001, %v994
    %v1653 = vpack.c.b16 %v1002, %v995
    %v1654 = vpack.c.b16 %v1003, %v996
    %v1655 = vpack.c.b16 %v1004, %v997
    %v1656 = vpack.c.b16 %v1005, %v998
    %v1657 = vpack.c.b16 %v1006, %v999
    %v1658 = vpack.c.b16 %v1014, %v1007
    %v1659 = vpack.c.b16 %v1015, %v1008
    %v1660 = vpack.c.b16 %v1016, %v1009
    %v1661 = vpack.c.b16 %v1017, %v1010
    %v1662 = vpack.c.b16 %v1018, %v1011
    %v1663 = vpack.c.b16 %v1019, %v1012
    %v1664 = vpack.c.b16 %v1020, %v1013
    %v1665 = vpack.c.b16 %v1028, %v1021
    %v1666 = vpack.c.b16 %v1029, %v1022
    %v1667 = vpack.c.b16 %v1030, %v1023
    %v1668 = vpack.c.b16 %v1031, %v1024
    %v1669 = vpack.c.b16 %v1032, %v1025
    %v1670 = vpack.c.b16 %v1033, %v1026
    %v1671 = vpack.c.b16 %v1034, %v1027
    %v1672 = vpack.c.b16 %v1042, %v1035
    %v1673 = vpack.c.b16 %v1043, %v1036
    %v1674 = vpack.c.b16 %v1044, %v1037
    %v1675 = vpack.c.b16 %v1045, %v1038
    %v1676 = vpack.c.b16 %v1046, %v1039
    %v1677 = vpack.c.b16 %v1047, %v1040
    %v1678 = vpack.c.b16 %v1048, %v1041
    %v1679 = vpack.c.b16 %v1056, %v1049
    %v1680 = vpack.c.b16 %v1057, %v1050
    %v1681 = vpack.c.b16 %v1058, %v1051
    %v1682 = vpack.c.b16 %v1059, %v1052
    %v1683 = vpack.c.b16 %v1060, %v1053
    %v1684 = vpack.c.b16 %v1061, %v1054
    %v1685 = vpack.c.b16 %v1062, %v1055
    %v1686 = vpack.c.b16 %v1070, %v1063
    %v1687 = vpack.c.b16 %v1071, %v1064
    %v1688 = vpack.c.b16 %v1072, %v1065
    %v1689 = vpack.c.b16 %v1073, %v1066
    %v1690 = vpack.c.b16 %v1074, %v1067
    %v1691 = vpack.c.b16 %v1075, %v1068
    %v1692 = vpack.c.b16 %v1076, %v1069
    %v1693 = vpack.c.b16 %v1084, %v1077
    %v1694 = vpack.c.b16 %v1085, %v1078
    %v1695 = vpack.c.b16 %v1086, %v1079
    %v1696 = vpack.c.b16 %v1087, %v1080
    %v1697 = vpack.c.b16 %v1088, %v1081
    %v1698 = vpack.c.b16 %v1089, %v1082
    %v1699 = vpack.c.b16 %v1090, %v1083
    %v1700 = vpack.c.b16 %v1098, %v1091
    %v1701 = vpack.c.b16 %v1099, %v1092
    %v1702 = vpack.c.b16 %v1100, %v1093
    %v1703 = vpack.c.b16 %v1101, %v1094
    %v1704 = vpack.c.b16 %v1102, %v1095
    %v1705 = vpack.c.b16 %v1103, %v1096
    %v1706 = vpack.c.b16 %v1104, %v1097
    %v1707 = vpack.c.b16 %v1112, %v1105
    %v1708 = vpack.c.b16 %v1113, %v1106
    %v1709 = vpack.c.b16 %v1114, %v1107
    %v1710 = vpack.c.b16 %v1115, %v1108
    %v1711 = vpack.c.b16 %v1116, %v1109
    %v1712 = vpack.c.b16 %v1117, %v1110
    %v1713 = vpack.c.b16 %v1118, %v1111
    %v1714 = vpack.c.b16 %v1126, %v1119
    %v1715 = vpack.c.b16 %v1127, %v1120
    %v1716 = vpack.c.b16 %v1128, %v1121
    %v1717 = vpack.c.b16 %v1129, %v1122
    %v1718 = vpack.c.b16 %v1130, %v1123
    %v1719 = vpack.c.b16 %v1131, %v1124
    %v1720 = vpack.c.b16 %v1132, %v1125
    %v1721 = vpack.c.b16 %v1140, %v1133
    %v1722 = vpack.c.b16 %v1141, %v1134
    %v1723 = vpack.c.b16 %v1142, %v1135
    %v1724 = vpack.c.b16 %v1143, %v1136
    %v1725 = vpack.c.b16 %v1144, %v1137
    %v1726 = vpack.c.b16 %v1145, %v1138
    %v1727 = vpack.c.b16 %v1146, %v1139
    %v1728 = vpack.c.b16 %v1154, %v1147
    %v1729 = vpack.c.b16 %v1155, %v1148
    %v1730 = vpack.c.b16 %v1156, %v1149
    %v1731 = vpack.c.b16 %v1157, %v1150
    %v1732 = vpack.c.b16 %v1158, %v1151
    %v1733 = vpack.c.b16 %v1159, %v1152
    %v1734 = vpack.c.b16 %v1160, %v1153
    %v1735 = vpack.c.b16 %v1168, %v1161
    %v1736 = vpack.c.b16 %v1169, %v1162
    %v1737 = vpack.c.b16 %v1170, %v1163
    %v1738 = vpack.c.b16 %v1171, %v1164
    %v1739 = vpack.c.b16 %v1172, %v1165
    %v1740 = vpack.c.b16 %v1173, %v1166
    %v1741 = vpack.c.b16 %v1174, %v1167
    %v1742 = vpack.c.b16 %v1182, %v1175
    %v1743 = vpack.c.b16 %v1183, %v1176
    %v1744 = vpack.c.b16 %v1184, %v1177
    %v1745 = vpack.c.b16 %v1185, %v1178
    %v1746 = vpack.c.b16 %v1186, %v1179
    %v1747 = vpack.c.b16 %v1187, %v1180
    %v1748 = vpack.c.b16 %v1188, %v1181
    %v1749 = vpack.c.b16 %v1196, %v1189
    %v1750 = vpack.c.b16 %v1197, %v1190
    %v1751 = vpack.c.b16 %v1198, %v1191
    %v1752 = vpack.c.b16 %v1199, %v1192
    %v1753 = vpack.c.b16 %v1200, %v1193
    %v1754 = vpack.c.b16 %v1201, %v1194
    %v1755 = vpack.c.b16 %v1202, %v1195
    %v1756 = vpack.c.b16 %v1210, %v1203
    %v1757 = vpack.c.b16 %v1211, %v1204
    %v1758 = vpack.c.b16 %v1212, %v1205
    %v1759 = vpack.c.b16 %v1213, %v1206
    %v1760 = vpack.c.b16 %v1214, %v1207
    %v1761 = vpack.c.b16 %v1215, %v1208
    %v1762 = vpack.c.b16 %v1216, %v1209
    %v1763 = vpack.c.b16 %v1224, %v1217
    %v1764 = vpack.c.b16 %v1225, %v1218
    %v1765 = vpack.c.b16 %v1226, %v1219
    %v1766 = vpack.c.b16 %v1227, %v1220
    %v1767 = vpack.c.b16 %v1228, %v1221
    %v1768 = vpack.c.b16 %v1229, %v1222
    %v1769 = vpack.c.b16 %v1230, %v1223
    %v1770 = vpack.c.b16 %v1238, %v1231
    %v1771 = vpack.c.b16 %v1239, %v1232
    %v1772 = vpack.c.b16 %v1240, %v1233
    %v1773 = vpack.c.b16 %v1241, %v1234
    %v1774 = vpack.c.b16 %v1242, %v1235
    %v1775 = vpack.c.b16 %v1243, %v1236
    %v1776 = vpack.c.b16 %v1244, %v1237
    %v1777 = vpack.c.b16 %v1252, %v1245
    %v1778 = vpack.c.b16 %v1253, %v1246
    %v1779 = vpack.c.b16 %v1254, %v1247
    %v1780 = vpack.c.b16 %v1255, %v1248
    %v1781 = vpack.c.b16 %v1256, %v1249
    %v1782 = vpack.c.b16 %v1257, %v1250
    %v1783 = vpack.c.b16 %v1258, %v1251
    %v1784 = vpack.c.b16 %v1266, %v1259
    %v1785 = vpack.c.b16 %v1267, %v1260
    %v1786 = vpack.c.b16 %v1268, %v1261
    %v1787 = vpack.c.b16 %v1269, %v1262
    %v1788 = vpack.c.b16 %v1270, %v1263
    %v1789 = vpack.c.b16 %v1271, %v1264
    %v1790 = vpack.c.b16 %v1272, %v1265
    %v1791 = vpack.c.b16 %v1280, %v1273
    %v1792 = vpack.c.b16 %v1281, %v1274
    %v1793 = vpack.c.b16 %v1282, %v1275
    %v1794 = vpack.c.b16 %v1283, %v1276
    %v1795 = vpack.c.b16 %v1284, %v1277
    %v1796 = vpack.c.b16 %v1285, %v1278
    %v1797 = vpack.c.b16 %v1286, %v1279
    %v1798 = vpack.c.b16 %v1294, %v1287
    %v1799 = vpack.c.b16 %v1295, %v1288
    %v1800 = vpack.c.b16 %v1296, %v1289
    %v1801 = vpack.c.b16 %v1297, %v1290
    %v1802 = vpack.c.b16 %v1298, %v1291
    %v1803 = vpack.c.b16 %v1299, %v1292
    %v1804 = vpack.c.b16 %v1300, %v1293
    %v1805 = vpack.c.b16 %v1308, %v1301
    %v1806 = vpack.c.b16 %v1309, %v1302
    %v1807 = vpack.c.b16 %v1310, %v1303
    %v1808 = vpack.c.b16 %v1311, %v1304
    %v1809 = vpack.c.b16 %v1312, %v1305
    %v1810 = vpack.c.b16 %v1313, %v1306
    %v1811 = vpack.c.b16 %v1314, %v1307
    %v1812 = vpack.c.b16 %v1322, %v1315
    %v1813 = vpack.c.b16 %v1323, %v1316
    %v1814 = vpack.c.b16 %v1324, %v1317
    %v1815 = vpack.c.b16 %v1325, %v1318
    %v1816 = vpack.c.b16 %v1326, %v1319
    %v1817 = vpack.c.b16 %v1327, %v1320
    %v1818 = vpack.c.b16 %v1328, %v1321
    %v1819 = vpack.c.b16 %v1336, %v1329
    %v1820 = vpack.c.b16 %v1337, %v1330
    %v1821 = vpack.c.b16 %v1338, %v1331
    %v1822 = vpack.c.b16 %v1339, %v1332
    %v1823 = vpack.c.b16 %v1340, %v1333
    %v1824 = vpack.c.b16 %v1341, %v1334
    %v1825 = vpack.c.b16 %v1342, %v1335
    %v1826 = vpack.c.b16 %v1350, %v1343
    %v1827 = vpack.c.b16 %v1351, %v1344
    %v1828 = vpack.c.b16 %v1352, %v1345
    %v1829 = vpack.c.b16 %v1353, %v1346
    %v1830 = vpack.c.b16 %v1354, %v1347
    %v1831 = vpack.c.b16 %v1355, %v1348
    %v1832 = vpack.c.b16 %v1356, %v1349
    %v1833 = vpack.c.b16 %v1364, %v1357
    %v1834 = vpack.c.b16 %v1365, %v1358
    %v1835 = vpack.c.b16 %v1366, %v1359
    %v1836 = vpack.c.b16 %v1367, %v1360
    %v1837 = vpack.c.b16 %v1368, %v1361
    %v1838 = vpack.c.b16 %v1369, %v1362
    %v1839 = vpack.c.b16 %v1370, %v1363
    %v1840 = vpack.c.b16 %v1378, %v1371
    %v1841 = vpack.c.b16 %v1379, %v1372
    %v1842 = vpack.c.b16 %v1380, %v1373
    %v1843 = vpack.c.b16 %v1381, %v1374
    %v1844 = vpack.c.b16 %v1382, %v1375
    %v1845 = vpack.c.b16 %v1383, %v1376
    %v1846 = vpack.c.b16 %v1384, %v1377
    %v1847 = vpack.c.b16 %v1392, %v1385
    %v1848 = vpack.c.b16 %v1393, %v1386
    %v1849 = vpack.c.b16 %v1394, %v1387
    %v1850 = vpack.c.b16 %v1395, %v1388
    %v1851 = vpack.c.b16 %v1396, %v1389
    %v1852 = vpack.c.b16 %v1397, %v1390
    %v1853 = vpack.c.b16 %v1398, %v1391
    %v1854 = vpack.c.b16 %v1406, %v1399
    %v1855 = vpack.c.b16 %v1407, %v1400
    %v1856 = vpack.c.b16 %v1408, %v1401
    %v1857 = vpack.c.b16 %v1409, %v1402
    %v1858 = vpack.c.b16 %v1410, %v1403
    %v1859 = vpack.c.b16 %v1411, %v1404
    %v1860 = vpack.c.b16 %v1412, %v1405
    %v1861 = vpack.c.b16 %v1420, %v1413
    %v1862 = vpack.c.b16 %v1421, %v1414
    %v1863 = vpack.c.b16 %v1422, %v1415
    %v1864 = vpack.c.b16 %v1423, %v1416
    %v1865 = vpack.c.b16 %v1424, %v1417
    %v1866 = vpack.c.b16 %v1425, %v1418
    %v1867 = vpack.c.b16 %v1426, %v1419
    %v1868 = vpack.c.b16 %v1434, %v1427
    %v1869 = vpack.c.b16 %v1435, %v1428
    %v1870 = vpack.c.b16 %v1436, %v1429
    %v1871 = vpack.c.b16 %v1437, %v1430
    %v1872 = vpack.c.b16 %v1438, %v1431
    %v1873 = vpack.c.b16 %v1439, %v1432
    %v1874 = vpack.c.b16 %v1440, %v1433
    %v1875 = vpack.c.b16 %v1448, %v1441
    %v1876 = vpack.c.b16 %v1449, %v1442
    %v1877 = vpack.c.b16 %v1450, %v1443
    %v1878 = vpack.c.b16 %v1451, %v1444
    %v1879 = vpack.c.b16 %v1452, %v1445
    %v1880 = vpack.c.b16 %v1453, %v1446
    %v1881 = vpack.c.b16 %v1454, %v1447
    %v1882 = vpack.c.b16 %v1462, %v1455
    %v1883 = vpack.c.b16 %v1463, %v1456
    %v1884 = vpack.c.b16 %v1464, %v1457
    %v1885 = vpack.c.b16 %v1465, %v1458
    %v1886 = vpack.c.b16 %v1466, %v1459
    %v1887 = vpack.c.b16 %v1467, %v1460
    %v1888 = vpack.c.b16 %v1468, %v1461
    %v1889 = vpack.c.b16 %v1476, %v1469
    %v1890 = vpack.c.b16 %v1477, %v1470
    %v1891 = vpack.c.b16 %v1478, %v1471
    %v1892 = vpack.c.b16 %v1479, %v1472
    %v1893 = vpack.c.b16 %v1480, %v1473
    %v1894 = vpack.c.b16 %v1481, %v1474
    %v1895 = vpack.c.b16 %v1482, %v1475
    %v1896 = vpack.c.b16 %v1490, %v1483
    %v1897 = vpack.c.b16 %v1491, %v1484
    %v1898 = vpack.c.b16 %v1492, %v1485
    %v1899 = vpack.c.b16 %v1493, %v1486
    %v1900 = vpack.c.b16 %v1494, %v1487
    %v1901 = vpack.c.b16 %v1495, %v1488
    %v1902 = vpack.c.b16 %v1496, %v1489
    %v1903 = vpack.c.b16 %v1504, %v1497
    %v1904 = vpack.c.b16 %v1505, %v1498
    %v1905 = vpack.c.b16 %v1506, %v1499
    %v1906 = vpack.c.b16 %v1507, %v1500
    %v1907 = vpack.c.b16 %v1508, %v1501
    %v1908 = vpack.c.b16 %v1509, %v1502
    %v1909 = vpack.c.b16 %v1510, %v1503
    %v1910 = vpack.c.b16 %v1518, %v1511
    %v1911 = vpack.c.b16 %v1519, %v1512
    %v1912 = vpack.c.b16 %v1520, %v1513
    %v1913 = vpack.c.b16 %v1521, %v1514
    %v1914 = vpack.c.b16 %v1522, %v1515
    %v1915 = vpack.c.b16 %v1523, %v1516
    %v1916 = vpack.c.b16 %v1524, %v1517
    %v1917 = vpack.c.b16 %v1532, %v1525
    %v1918 = vpack.c.b16 %v1533, %v1526
    %v1919 = vpack.c.b16 %v1534, %v1527
    %v1920 = vpack.c.b16 %v1535, %v1528
    %v1921 = vpack.c.b16 %v1536, %v1529
    %v1922 = vpack.c.b16 %v1537, %v1530
    %v1923 = vpack.c.b16 %v1538, %v1531
    %v1924 = vpack.c.b16 %v1546, %v1539
    %v1925 = vpack.c.b16 %v1547, %v1540
    %v1926 = vpack.c.b16 %v1548, %v1541
    %v1927 = vpack.c.b16 %v1549, %v1542
    %v1928 = vpack.c.b16 %v1550, %v1543
    %v1929 = vpack.c.b16 %v1551, %v1544
    %v1930 = vpack.c.b16 %v1552, %v1545
    %v1931 = vpack.c.b16 %v1560, %v1553
    %v1932 = vpack.c.b16 %v1561, %v1554
    %v1933 = vpack.c.b16 %v1562, %v1555
    %v1934 = vpack.c.b16 %v1563, %v1556
    %v1935 = vpack.c.b16 %v1564, %v1557
    %v1936 = vpack.c.b16 %v1565, %v1558
    %v1937 = vpack.c.b16 %v1566, %v1559
    %v1938 = vpack.c.b16 %v1574, %v1567
    %v1939 = vpack.c.b16 %v1575, %v1568
    %v1940 = vpack.c.b16 %v1576, %v1569
    %v1941 = vpack.c.b16 %v1577, %v1570
    %v1942 = vpack.c.b16 %v1578, %v1571
    %v1943 = vpack.c.b16 %v1579, %v1572
    %v1944 = vpack.c.b16 %v1580, %v1573
    %v1945 = vpack.c.b16 %v1588, %v1581
    %v1946 = vpack.c.b16 %v1589, %v1582
    %v1947 = vpack.c.b16 %v1590, %v1583
    %v1948 = vpack.c.b16 %v1591, %v1584
    %v1949 = vpack.c.b16 %v1592, %v1585
    %v1950 = vpack.c.b16 %v1593, %v1586
    %v1951 = vpack.c.b16 %v1594, %v1587
    %v1952 = vpack.c.b16 %v1602, %v1595
    %v1953 = vpack.c.b16 %v1603, %v1596
    %v1954 = vpack.c.b16 %v1604, %v1597
    %v1955 = vpack.c.b16 %v1605, %v1598
    %v1956 = vpack.c.b16 %v1606, %v1599
    %v1957 = vpack.c.b16 %v1607, %v1600
    %v1958 = vpack.c.b16 %v1608, %v1601
    %v1959 = vpack.c.b16 %v1616, %v1609
    %v1960 = vpack.c.b16 %v1617, %v1610
    %v1961 = vpack.c.b16 %v1618, %v1611
    %v1962 = vpack.c.b16 %v1619, %v1612
    %v1963 = vpack.c.b16 %v1620, %v1613
    %v1964 = vpack.c.b16 %v1621, %v1614
    %v1965 = vpack.c.b16 %v1622, %v1615
    %vm2309 = vcmask 130048
    %v2311 = vsel %vm2309, %v115, 0
    %2313 = vmatprep.subr.bf16.mxu0 %v1673
    %2314 = vmatpush1.bf16.msra.mxu0 %v1672
    %2315 = vmatprep.subr.bf16.mxu0 %v1666
    %2316 = vmatpush1.bf16.msra.mxu0 %v1665
    %2317 = vmatprep.subr.bf16.mxu0 %v1659
    %2318 = vmatpush1.bf16.msra.mxu0 %v1658
    %2319 = vmatprep.subr.bf16.mxu0 %v1652
    %2320 = vmatpush1.bf16.msra.mxu0 %v1651
    %2321 = vmatprep.subr.bf16.mxu0 %v1645
    %2322 = vmatpush1.bf16.msra.mxu0 %v1644
    %2323 = vmatprep.subr.bf16.mxu0 %v1638
    %2324 = vmatpush1.bf16.msra.mxu0 %v1637
    %2325 = vmatprep.subr.bf16.mxu0 %v1631
    %2326 = vmatpush1.bf16.msra.mxu0 %v1630
    %2327 = vmatprep.subr.bf16.mxu0 %v1624
    %2328 = vmatpush1.bf16.msra.mxu0 %v1623
    %2329 = vmatprep.subr.bf16.mxu0 %v1729
    %2330 = vmatpush2.bf16.msra.mxu0 %v1728
    %2331 = vmatprep.subr.bf16.mxu0 %v1722
    %2332 = vmatpush2.bf16.msra.mxu0 %v1721
    %2333 = vmatprep.subr.bf16.mxu0 %v1715
    %2334 = vmatpush2.bf16.msra.mxu0 %v1714
    %2335 = vmatprep.subr.bf16.mxu0 %v1708
    %2336 = vmatpush2.bf16.msra.mxu0 %v1707
    %2337 = vmatprep.subr.bf16.mxu0 %v1701
    %2338 = vmatpush2.bf16.msra.mxu0 %v1700
    %2339 = vmatprep.subr.bf16.mxu0 %v1694
    %2340 = vmatpush2.bf16.msra.mxu0 %v1693
    %2341 = vmatprep.subr.bf16.mxu0 %v1687
    %2342 = vmatpush2.bf16.msra.mxu0 %v1686
    %2343 = vmatprep.subr.bf16.mxu0 %v1680
    %2344 = vmatpush2.bf16.msra.mxu0 %v1679
    %2345 = vmatprep.mubr.bf16.mxu0 %v110
    %2346 = vmatmul.mubr.bf16.gmra.mxu0 %v109
    %v2347 = vpop.f32.mrf.mxu0
    %v2348 = vadd.f32 %v513, %v2347
    %v2349 = vpop.f32.mrf.mxu0
    %v2350 = vadd.f32 %v517, %v2349
    %v2351 = vpop.f32.mrf.mxu0
    %v2352 = vpop.f32.mrf.mxu0
    %2353 = vdwg.mxu0
    %2354 = vmatprep.subr.bf16.mxu0 %v1785
    %2355 = vmatpush1.bf16.msra.mxu0 %v1784
    %2356 = vmatprep.subr.bf16.mxu0 %v1778
    %2357 = vmatpush1.bf16.msra.mxu0 %v1777
    %2358 = vmatprep.subr.bf16.mxu0 %v1771
    %2359 = vmatpush1.bf16.msra.mxu0 %v1770
    %2360 = vmatprep.subr.bf16.mxu0 %v1764
    %2361 = vmatpush1.bf16.msra.mxu0 %v1763
    %2362 = vmatprep.subr.bf16.mxu0 %v1757
    %2363 = vmatpush1.bf16.msra.mxu0 %v1756
    %2364 = vmatprep.subr.bf16.mxu0 %v1750
    %2365 = vmatpush1.bf16.msra.mxu0 %v1749
    %2366 = vmatprep.subr.bf16.mxu0 %v1743
    %2367 = vmatpush1.bf16.msra.mxu0 %v1742
    %2368 = vmatprep.subr.bf16.mxu0 %v1736
    %2369 = vmatpush1.bf16.msra.mxu0 %v1735
    %2370 = vmatprep.subr.bf16.mxu0 %v1841
    %2371 = vmatpush2.bf16.msra.mxu0 %v1840
    %2372 = vmatprep.subr.bf16.mxu0 %v1834
    %2373 = vmatpush2.bf16.msra.mxu0 %v1833
    %2374 = vmatprep.subr.bf16.mxu0 %v1827
    %2375 = vmatpush2.bf16.msra.mxu0 %v1826
    %2376 = vmatprep.subr.bf16.mxu0 %v1820
    %2377 = vmatpush2.bf16.msra.mxu0 %v1819
    %2378 = vmatprep.subr.bf16.mxu0 %v1813
    %2379 = vmatpush2.bf16.msra.mxu0 %v1812
    %2380 = vmatprep.subr.bf16.mxu0 %v1806
    %2381 = vmatpush2.bf16.msra.mxu0 %v1805
    %2382 = vmatprep.subr.bf16.mxu0 %v1799
    %2383 = vmatpush2.bf16.msra.mxu0 %v1798
    %2384 = vmatprep.subr.bf16.mxu0 %v1792
    %2385 = vmatpush2.bf16.msra.mxu0 %v1791
    %2386 = vmatprep.mubr.bf16.mxu0 %v112
    %2387 = vmatmul.mubr.bf16.gmra.mxu0 %v111
    %v2388 = vpop.f32.mrf.mxu0
    %v2389 = vadd.f32 %v2348, %v2388
    %v2390 = vpop.f32.mrf.mxu0
    %v2391 = vadd.f32 %v2350, %v2390
    %v2392 = vpop.f32.mrf.mxu0
    %v2393 = vpop.f32.mrf.mxu0
    %2394 = vdwg.mxu0
    %2395 = vmatprep.subr.bf16.mxu0 %v1897
    %2396 = vmatpush1.bf16.msra.mxu0 %v1896
    %2397 = vmatprep.subr.bf16.mxu0 %v1890
    %2398 = vmatpush1.bf16.msra.mxu0 %v1889
    %2399 = vmatprep.subr.bf16.mxu0 %v1883
    %2400 = vmatpush1.bf16.msra.mxu0 %v1882
    %2401 = vmatprep.subr.bf16.mxu0 %v1876
    %2402 = vmatpush1.bf16.msra.mxu0 %v1875
    %2403 = vmatprep.subr.bf16.mxu0 %v1869
    %2404 = vmatpush1.bf16.msra.mxu0 %v1868
    %2405 = vmatprep.subr.bf16.mxu0 %v1862
    %2406 = vmatpush1.bf16.msra.mxu0 %v1861
    %2407 = vmatprep.subr.bf16.mxu0 %v1855
    %2408 = vmatpush1.bf16.msra.mxu0 %v1854
    %2409 = vmatprep.subr.bf16.mxu0 %v1848
    %2410 = vmatpush1.bf16.msra.mxu0 %v1847
    %2411 = vmatprep.subr.bf16.mxu0 %v1953
    %2412 = vmatpush2.bf16.msra.mxu0 %v1952
    %2413 = vmatprep.subr.bf16.mxu0 %v1946
    %2414 = vmatpush2.bf16.msra.mxu0 %v1945
    %2415 = vmatprep.subr.bf16.mxu0 %v1939
    %2416 = vmatpush2.bf16.msra.mxu0 %v1938
    %2417 = vmatprep.subr.bf16.mxu0 %v1932
    %2418 = vmatpush2.bf16.msra.mxu0 %v1931
    %2419 = vmatprep.subr.bf16.mxu0 %v1925
    %2420 = vmatpush2.bf16.msra.mxu0 %v1924
    %2421 = vmatprep.subr.bf16.mxu0 %v1918
    %2422 = vmatpush2.bf16.msra.mxu0 %v1917
    %2423 = vmatprep.subr.bf16.mxu0 %v1911
    %2424 = vmatpush2.bf16.msra.mxu0 %v1910
    %2425 = vmatprep.subr.bf16.mxu0 %v1904
    %2426 = vmatpush2.bf16.msra.mxu0 %v1903
    %2427 = vmatprep.mubr.bf16.mxu0 %v114
    %2428 = vmatmul.mubr.bf16.gmra.mxu0 %v113
    %v2429 = vpop.f32.mrf.mxu0
    %v2430 = vadd.f32 %v2389, %v2429
    %v2431 = vpop.f32.mrf.mxu0
    %v2432 = vadd.f32 %v2391, %v2431
    %v2433 = vpop.f32.mrf.mxu0
    %v2434 = vpop.f32.mrf.mxu0
    %2435 = vdwg.mxu0
    %2436 = vmatprep.subr.bf16.mxu0 0
    %2437 = vmatpush1.bf16.msra.mxu0 0
    %2438 = vmatprep.subr.bf16.mxu0 0
    %2439 = vmatpush1.bf16.msra.mxu0 0
    %2440 = vmatprep.subr.bf16.mxu0 0
    %2441 = vmatpush1.bf16.msra.mxu0 0
    %2442 = vmatprep.subr.bf16.mxu0 0
    %2443 = vmatpush1.bf16.msra.mxu0 0
    %2444 = vmatprep.subr.bf16.mxu0 0
    %2445 = vmatpush1.bf16.msra.mxu0 0
    %2446 = vmatprep.subr.bf16.mxu0 0
    %2447 = vmatpush1.bf16.msra.mxu0 0
    %2448 = vmatprep.subr.bf16.mxu0 0
    %2449 = vmatpush1.bf16.msra.mxu0 0
    %2450 = vmatprep.subr.bf16.mxu0 %v1960
    %2451 = vmatpush1.bf16.msra.mxu0 %v1959
    %2452 = vmatprep.subr.bf16.mxu0 0
    %2453 = vmatpush2.bf16.msra.mxu0 0
    %2454 = vmatprep.subr.bf16.mxu0 0
    %2455 = vmatpush2.bf16.msra.mxu0 0
    %2456 = vmatprep.subr.bf16.mxu0 0
    %2457 = vmatpush2.bf16.msra.mxu0 0
    %2458 = vmatprep.subr.bf16.mxu0 0
    %2459 = vmatpush2.bf16.msra.mxu0 0
    %2460 = vmatprep.subr.bf16.mxu0 0
    %2461 = vmatpush2.bf16.msra.mxu0 0
    %2462 = vmatprep.subr.bf16.mxu0 0
    %2463 = vmatpush2.bf16.msra.mxu0 0
    %2464 = vmatprep.subr.bf16.mxu0 0
    %2465 = vmatpush2.bf16.msra.mxu0 0
    %2466 = vmatprep.subr.bf16.mxu0 0
    %2467 = vmatpush2.bf16.msra.mxu0 0
    %2468 = vmatprep.mubr.bf16.mxu0 0
    %2469 = vmatmul.mubr.bf16.gmra.mxu0 %v2311
    %v2470 = vpop.f32.mrf.mxu0
    %v2471 = vadd.f32 %v2430, %v2470
    %v2472 = vpop.f32.mrf.mxu0
    %v2473 = vadd.f32 %v2432, %v2472
    %v2474 = vpop.f32.mrf.mxu0
    %v2475 = vpop.f32.mrf.mxu0
    %2476 = vdwg.mxu0
    %2477 = vmatprep.subr.bf16.mxu0 %v1675
    %2478 = vmatpush1.bf16.msra.mxu0 %v1674
    %2479 = vmatprep.subr.bf16.mxu0 %v1668
    %2480 = vmatpush1.bf16.msra.mxu0 %v1667
    %2481 = vmatprep.subr.bf16.mxu0 %v1661
    %2482 = vmatpush1.bf16.msra.mxu0 %v1660
    %2483 = vmatprep.subr.bf16.mxu0 %v1654
    %2484 = vmatpush1.bf16.msra.mxu0 %v1653
    %2485 = vmatprep.subr.bf16.mxu0 %v1647
    %2486 = vmatpush1.bf16.msra.mxu0 %v1646
    %2487 = vmatprep.subr.bf16.mxu0 %v1640
    %2488 = vmatpush1.bf16.msra.mxu0 %v1639
    %2489 = vmatprep.subr.bf16.mxu0 %v1633
    %2490 = vmatpush1.bf16.msra.mxu0 %v1632
    %2491 = vmatprep.subr.bf16.mxu0 %v1626
    %2492 = vmatpush1.bf16.msra.mxu0 %v1625
    %2493 = vmatprep.subr.bf16.mxu0 %v1731
    %2494 = vmatpush2.bf16.msra.mxu0 %v1730
    %2495 = vmatprep.subr.bf16.mxu0 %v1724
    %2496 = vmatpush2.bf16.msra.mxu0 %v1723
    %2497 = vmatprep.subr.bf16.mxu0 %v1717
    %2498 = vmatpush2.bf16.msra.mxu0 %v1716
    %2499 = vmatprep.subr.bf16.mxu0 %v1710
    %2500 = vmatpush2.bf16.msra.mxu0 %v1709
    %2501 = vmatprep.subr.bf16.mxu0 %v1703
    %2502 = vmatpush2.bf16.msra.mxu0 %v1702
    %2503 = vmatprep.subr.bf16.mxu0 %v1696
    %2504 = vmatpush2.bf16.msra.mxu0 %v1695
    %2505 = vmatprep.subr.bf16.mxu0 %v1689
    %2506 = vmatpush2.bf16.msra.mxu0 %v1688
    %2507 = vmatprep.subr.bf16.mxu0 %v1682
    %2508 = vmatpush2.bf16.msra.mxu0 %v1681
    %2509 = vmatprep.mubr.bf16.mxu0 %v110
    %2510 = vmatmul.mubr.bf16.gmra.mxu0 %v109
    %v2511 = vpop.f32.mrf.mxu0
    %v2512 = vadd.f32 %v521, %v2511
    %v2513 = vpop.f32.mrf.mxu0
    %v2514 = vadd.f32 %v525, %v2513
    %v2515 = vpop.f32.mrf.mxu0
    %v2516 = vpop.f32.mrf.mxu0
    %2517 = vdwg.mxu0
    %2518 = vmatprep.subr.bf16.mxu0 %v1787
    %2519 = vmatpush1.bf16.msra.mxu0 %v1786
    %2520 = vmatprep.subr.bf16.mxu0 %v1780
    %2521 = vmatpush1.bf16.msra.mxu0 %v1779
    %2522 = vmatprep.subr.bf16.mxu0 %v1773
    %2523 = vmatpush1.bf16.msra.mxu0 %v1772
    %2524 = vmatprep.subr.bf16.mxu0 %v1766
    %2525 = vmatpush1.bf16.msra.mxu0 %v1765
    %2526 = vmatprep.subr.bf16.mxu0 %v1759
    %2527 = vmatpush1.bf16.msra.mxu0 %v1758
    %2528 = vmatprep.subr.bf16.mxu0 %v1752
    %2529 = vmatpush1.bf16.msra.mxu0 %v1751
    %2530 = vmatprep.subr.bf16.mxu0 %v1745
    %2531 = vmatpush1.bf16.msra.mxu0 %v1744
    %2532 = vmatprep.subr.bf16.mxu0 %v1738
    %2533 = vmatpush1.bf16.msra.mxu0 %v1737
    %2534 = vmatprep.subr.bf16.mxu0 %v1843
    %2535 = vmatpush2.bf16.msra.mxu0 %v1842
    %2536 = vmatprep.subr.bf16.mxu0 %v1836
    %2537 = vmatpush2.bf16.msra.mxu0 %v1835
    %2538 = vmatprep.subr.bf16.mxu0 %v1829
    %2539 = vmatpush2.bf16.msra.mxu0 %v1828
    %2540 = vmatprep.subr.bf16.mxu0 %v1822
    %2541 = vmatpush2.bf16.msra.mxu0 %v1821
    %2542 = vmatprep.subr.bf16.mxu0 %v1815
    %2543 = vmatpush2.bf16.msra.mxu0 %v1814
    %2544 = vmatprep.subr.bf16.mxu0 %v1808
    %2545 = vmatpush2.bf16.msra.mxu0 %v1807
    %2546 = vmatprep.subr.bf16.mxu0 %v1801
    %2547 = vmatpush2.bf16.msra.mxu0 %v1800
    %2548 = vmatprep.subr.bf16.mxu0 %v1794
    %2549 = vmatpush2.bf16.msra.mxu0 %v1793
    %2550 = vmatprep.mubr.bf16.mxu0 %v112
    %2551 = vmatmul.mubr.bf16.gmra.mxu0 %v111
    %v2552 = vpop.f32.mrf.mxu0
    %v2553 = vadd.f32 %v2512, %v2552
    %v2554 = vpop.f32.mrf.mxu0
    %v2555 = vadd.f32 %v2514, %v2554
    %v2556 = vpop.f32.mrf.mxu0
    %v2557 = vpop.f32.mrf.mxu0
    %2558 = vdwg.mxu0
    %2559 = vmatprep.subr.bf16.mxu0 %v1899
    %2560 = vmatpush1.bf16.msra.mxu0 %v1898
    %2561 = vmatprep.subr.bf16.mxu0 %v1892
    %2562 = vmatpush1.bf16.msra.mxu0 %v1891
    %2563 = vmatprep.subr.bf16.mxu0 %v1885
    %2564 = vmatpush1.bf16.msra.mxu0 %v1884
    %2565 = vmatprep.subr.bf16.mxu0 %v1878
    %2566 = vmatpush1.bf16.msra.mxu0 %v1877
    %2567 = vmatprep.subr.bf16.mxu0 %v1871
    %2568 = vmatpush1.bf16.msra.mxu0 %v1870
    %2569 = vmatprep.subr.bf16.mxu0 %v1864
    %2570 = vmatpush1.bf16.msra.mxu0 %v1863
    %2571 = vmatprep.subr.bf16.mxu0 %v1857
    %2572 = vmatpush1.bf16.msra.mxu0 %v1856
    %2573 = vmatprep.subr.bf16.mxu0 %v1850
    %2574 = vmatpush1.bf16.msra.mxu0 %v1849
    %2575 = vmatprep.subr.bf16.mxu0 %v1955
    %2576 = vmatpush2.bf16.msra.mxu0 %v1954
    %2577 = vmatprep.subr.bf16.mxu0 %v1948
    %2578 = vmatpush2.bf16.msra.mxu0 %v1947
    %2579 = vmatprep.subr.bf16.mxu0 %v1941
    %2580 = vmatpush2.bf16.msra.mxu0 %v1940
    %2581 = vmatprep.subr.bf16.mxu0 %v1934
    %2582 = vmatpush2.bf16.msra.mxu0 %v1933
    %2583 = vmatprep.subr.bf16.mxu0 %v1927
    %2584 = vmatpush2.bf16.msra.mxu0 %v1926
    %2585 = vmatprep.subr.bf16.mxu0 %v1920
    %2586 = vmatpush2.bf16.msra.mxu0 %v1919
    %2587 = vmatprep.subr.bf16.mxu0 %v1913
    %2588 = vmatpush2.bf16.msra.mxu0 %v1912
    %2589 = vmatprep.subr.bf16.mxu0 %v1906
    %2590 = vmatpush2.bf16.msra.mxu0 %v1905
    %2591 = vmatprep.mubr.bf16.mxu0 %v114
    %2592 = vmatmul.mubr.bf16.gmra.mxu0 %v113
    %v2593 = vpop.f32.mrf.mxu0
    %v2594 = vadd.f32 %v2553, %v2593
    %v2595 = vpop.f32.mrf.mxu0
    %v2596 = vadd.f32 %v2555, %v2595
    %v2597 = vpop.f32.mrf.mxu0
    %v2598 = vpop.f32.mrf.mxu0
    %2599 = vdwg.mxu0
    %2600 = vmatprep.subr.bf16.mxu0 0
    %2601 = vmatpush1.bf16.msra.mxu0 0
    %2602 = vmatprep.subr.bf16.mxu0 0
    %2603 = vmatpush1.bf16.msra.mxu0 0
    %2604 = vmatprep.subr.bf16.mxu0 0
    %2605 = vmatpush1.bf16.msra.mxu0 0
    %2606 = vmatprep.subr.bf16.mxu0 0
    %2607 = vmatpush1.bf16.msra.mxu0 0
    %2608 = vmatprep.subr.bf16.mxu0 0
    %2609 = vmatpush1.bf16.msra.mxu0 0
    %2610 = vmatprep.subr.bf16.mxu0 0
    %2611 = vmatpush1.bf16.msra.mxu0 0
    %2612 = vmatprep.subr.bf16.mxu0 0
    %2613 = vmatpush1.bf16.msra.mxu0 0
    %2614 = vmatprep.subr.bf16.mxu0 %v1962
    %2615 = vmatpush1.bf16.msra.mxu0 %v1961
    %2616 = vmatprep.subr.bf16.mxu0 0
    %2617 = vmatpush2.bf16.msra.mxu0 0
    %2618 = vmatprep.subr.bf16.mxu0 0
    %2619 = vmatpush2.bf16.msra.mxu0 0
    %2620 = vmatprep.subr.bf16.mxu0 0
    %2621 = vmatpush2.bf16.msra.mxu0 0
    %2622 = vmatprep.subr.bf16.mxu0 0
    %2623 = vmatpush2.bf16.msra.mxu0 0
    %2624 = vmatprep.subr.bf16.mxu0 0
    %2625 = vmatpush2.bf16.msra.mxu0 0
    %2626 = vmatprep.subr.bf16.mxu0 0
    %2627 = vmatpush2.bf16.msra.mxu0 0
    %2628 = vmatprep.subr.bf16.mxu0 0
    %2629 = vmatpush2.bf16.msra.mxu0 0
    %2630 = vmatprep.subr.bf16.mxu0 0
    %2631 = vmatpush2.bf16.msra.mxu0 0
    %2632 = vmatprep.mubr.bf16.mxu0 0
    %2633 = vmatmul.mubr.bf16.gmra.mxu0 %v2311
    %v2634 = vpop.f32.mrf.mxu0
    %v2635 = vadd.f32 %v2594, %v2634
    %v2636 = vpop.f32.mrf.mxu0
    %v2637 = vadd.f32 %v2596, %v2636
    %v2638 = vpop.f32.mrf.mxu0
    %v2639 = vpop.f32.mrf.mxu0
    %2640 = vdwg.mxu0
    %2641 = vmatprep.subr.bf16.mxu0 %v1677
    %2642 = vmatpush1.bf16.msra.mxu0 %v1676
    %2643 = vmatprep.subr.bf16.mxu0 %v1670
    %2644 = vmatpush1.bf16.msra.mxu0 %v1669
    %2645 = vmatprep.subr.bf16.mxu0 %v1663
    %2646 = vmatpush1.bf16.msra.mxu0 %v1662
    %2647 = vmatprep.subr.bf16.mxu0 %v1656
    %2648 = vmatpush1.bf16.msra.mxu0 %v1655
    %2649 = vmatprep.subr.bf16.mxu0 %v1649
    %2650 = vmatpush1.bf16.msra.mxu0 %v1648
    %2651 = vmatprep.subr.bf16.mxu0 %v1642
    %2652 = vmatpush1.bf16.msra.mxu0 %v1641
    %2653 = vmatprep.subr.bf16.mxu0 %v1635
    %2654 = vmatpush1.bf16.msra.mxu0 %v1634
    %2655 = vmatprep.subr.bf16.mxu0 %v1628
    %2656 = vmatpush1.bf16.msra.mxu0 %v1627
    %2657 = vmatprep.subr.bf16.mxu0 %v1733
    %2658 = vmatpush2.bf16.msra.mxu0 %v1732
    %2659 = vmatprep.subr.bf16.mxu0 %v1726
    %2660 = vmatpush2.bf16.msra.mxu0 %v1725
    %2661 = vmatprep.subr.bf16.mxu0 %v1719
    %2662 = vmatpush2.bf16.msra.mxu0 %v1718
    %2663 = vmatprep.subr.bf16.mxu0 %v1712
    %2664 = vmatpush2.bf16.msra.mxu0 %v1711
    %2665 = vmatprep.subr.bf16.mxu0 %v1705
    %2666 = vmatpush2.bf16.msra.mxu0 %v1704
    %2667 = vmatprep.subr.bf16.mxu0 %v1698
    %2668 = vmatpush2.bf16.msra.mxu0 %v1697
    %2669 = vmatprep.subr.bf16.mxu0 %v1691
    %2670 = vmatpush2.bf16.msra.mxu0 %v1690
    %2671 = vmatprep.subr.bf16.mxu0 %v1684
    %2672 = vmatpush2.bf16.msra.mxu0 %v1683
    %2673 = vmatprep.mubr.bf16.mxu0 %v110
    %2674 = vmatmul.mubr.bf16.gmra.mxu0 %v109
    %v2675 = vpop.f32.mrf.mxu0
    %v2676 = vadd.f32 %v529, %v2675
    %v2677 = vpop.f32.mrf.mxu0
    %v2678 = vadd.f32 %v533, %v2677
    %v2679 = vpop.f32.mrf.mxu0
    %v2680 = vpop.f32.mrf.mxu0
    %2681 = vdwg.mxu0
    %2682 = vmatprep.subr.bf16.mxu0 %v1789
    %2683 = vmatpush1.bf16.msra.mxu0 %v1788
    %2684 = vmatprep.subr.bf16.mxu0 %v1782
    %2685 = vmatpush1.bf16.msra.mxu0 %v1781
    %2686 = vmatprep.subr.bf16.mxu0 %v1775
    %2687 = vmatpush1.bf16.msra.mxu0 %v1774
    %2688 = vmatprep.subr.bf16.mxu0 %v1768
    %2689 = vmatpush1.bf16.msra.mxu0 %v1767
    %2690 = vmatprep.subr.bf16.mxu0 %v1761
    %2691 = vmatpush1.bf16.msra.mxu0 %v1760
    %2692 = vmatprep.subr.bf16.mxu0 %v1754
    %2693 = vmatpush1.bf16.msra.mxu0 %v1753
    %2694 = vmatprep.subr.bf16.mxu0 %v1747
    %2695 = vmatpush1.bf16.msra.mxu0 %v1746
    %2696 = vmatprep.subr.bf16.mxu0 %v1740
    %2697 = vmatpush1.bf16.msra.mxu0 %v1739
    %2698 = vmatprep.subr.bf16.mxu0 %v1845
    %2699 = vmatpush2.bf16.msra.mxu0 %v1844
    %2700 = vmatprep.subr.bf16.mxu0 %v1838
    %2701 = vmatpush2.bf16.msra.mxu0 %v1837
    %2702 = vmatprep.subr.bf16.mxu0 %v1831
    %2703 = vmatpush2.bf16.msra.mxu0 %v1830
    %2704 = vmatprep.subr.bf16.mxu0 %v1824
    %2705 = vmatpush2.bf16.msra.mxu0 %v1823
    %2706 = vmatprep.subr.bf16.mxu0 %v1817
    %2707 = vmatpush2.bf16.msra.mxu0 %v1816
    %2708 = vmatprep.subr.bf16.mxu0 %v1810
    %2709 = vmatpush2.bf16.msra.mxu0 %v1809
    %2710 = vmatprep.subr.bf16.mxu0 %v1803
    %2711 = vmatpush2.bf16.msra.mxu0 %v1802
    %2712 = vmatprep.subr.bf16.mxu0 %v1796
    %2713 = vmatpush2.bf16.msra.mxu0 %v1795
    %2714 = vmatprep.mubr.bf16.mxu0 %v112
    %2715 = vmatmul.mubr.bf16.gmra.mxu0 %v111
    %v2716 = vpop.f32.mrf.mxu0
    %v2717 = vadd.f32 %v2676, %v2716
    %v2718 = vpop.f32.mrf.mxu0
    %v2719 = vadd.f32 %v2678, %v2718
    %v2720 = vpop.f32.mrf.mxu0
    %v2721 = vpop.f32.mrf.mxu0
    %2722 = vdwg.mxu0
    %2723 = vmatprep.subr.bf16.mxu0 %v1901
    %2724 = vmatpush1.bf16.msra.mxu0 %v1900
    %2725 = vmatprep.subr.bf16.mxu0 %v1894
    %2726 = vmatpush1.bf16.msra.mxu0 %v1893
    %2727 = vmatprep.subr.bf16.mxu0 %v1887
    %2728 = vmatpush1.bf16.msra.mxu0 %v1886
    %2729 = vmatprep.subr.bf16.mxu0 %v1880
    %2730 = vmatpush1.bf16.msra.mxu0 %v1879
    %2731 = vmatprep.subr.bf16.mxu0 %v1873
    %2732 = vmatpush1.bf16.msra.mxu0 %v1872
    %2733 = vmatprep.subr.bf16.mxu0 %v1866
    %2734 = vmatpush1.bf16.msra.mxu0 %v1865
    %2735 = vmatprep.subr.bf16.mxu0 %v1859
    %2736 = vmatpush1.bf16.msra.mxu0 %v1858
    %2737 = vmatprep.subr.bf16.mxu0 %v1852
    %2738 = vmatpush1.bf16.msra.mxu0 %v1851
    %2739 = vmatprep.subr.bf16.mxu0 %v1957
    %2740 = vmatpush2.bf16.msra.mxu0 %v1956
    %2741 = vmatprep.subr.bf16.mxu0 %v1950
    %2742 = vmatpush2.bf16.msra.mxu0 %v1949
    %2743 = vmatprep.subr.bf16.mxu0 %v1943
    %2744 = vmatpush2.bf16.msra.mxu0 %v1942
    %2745 = vmatprep.subr.bf16.mxu0 %v1936
    %2746 = vmatpush2.bf16.msra.mxu0 %v1935
    %2747 = vmatprep.subr.bf16.mxu0 %v1929
    %2748 = vmatpush2.bf16.msra.mxu0 %v1928
    %2749 = vmatprep.subr.bf16.mxu0 %v1922
    %2750 = vmatpush2.bf16.msra.mxu0 %v1921
    %2751 = vmatprep.subr.bf16.mxu0 %v1915
    %2752 = vmatpush2.bf16.msra.mxu0 %v1914
    %2753 = vmatprep.subr.bf16.mxu0 %v1908
    %2754 = vmatpush2.bf16.msra.mxu0 %v1907
    %2755 = vmatprep.mubr.bf16.mxu0 %v114
    %2756 = vmatmul.mubr.bf16.gmra.mxu0 %v113
    %v2757 = vpop.f32.mrf.mxu0
    %v2758 = vadd.f32 %v2717, %v2757
    %v2759 = vpop.f32.mrf.mxu0
    %v2760 = vadd.f32 %v2719, %v2759
    %v2761 = vpop.f32.mrf.mxu0
    %v2762 = vpop.f32.mrf.mxu0
    %2763 = vdwg.mxu0
    %2764 = vmatprep.subr.bf16.mxu0 0
    %2765 = vmatpush1.bf16.msra.mxu0 0
    %2766 = vmatprep.subr.bf16.mxu0 0
    %2767 = vmatpush1.bf16.msra.mxu0 0
    %2768 = vmatprep.subr.bf16.mxu0 0
    %2769 = vmatpush1.bf16.msra.mxu0 0
    %2770 = vmatprep.subr.bf16.mxu0 0
    %2771 = vmatpush1.bf16.msra.mxu0 0
    %2772 = vmatprep.subr.bf16.mxu0 0
    %2773 = vmatpush1.bf16.msra.mxu0 0
    %2774 = vmatprep.subr.bf16.mxu0 0
    %2775 = vmatpush1.bf16.msra.mxu0 0
    %2776 = vmatprep.subr.bf16.mxu0 0
    %2777 = vmatpush1.bf16.msra.mxu0 0
    %2778 = vmatprep.subr.bf16.mxu0 %v1964
    %2779 = vmatpush1.bf16.msra.mxu0 %v1963
    %2780 = vmatprep.subr.bf16.mxu0 0
    %2781 = vmatpush2.bf16.msra.mxu0 0
    %2782 = vmatprep.subr.bf16.mxu0 0
    %2783 = vmatpush2.bf16.msra.mxu0 0
    %2784 = vmatprep.subr.bf16.mxu0 0
    %2785 = vmatpush2.bf16.msra.mxu0 0
    %2786 = vmatprep.subr.bf16.mxu0 0
    %2787 = vmatpush2.bf16.msra.mxu0 0
    %2788 = vmatprep.subr.bf16.mxu0 0
    %2789 = vmatpush2.bf16.msra.mxu0 0
    %2790 = vmatprep.subr.bf16.mxu0 0
    %2791 = vmatpush2.bf16.msra.mxu0 0
    %2792 = vmatprep.subr.bf16.mxu0 0
    %2793 = vmatpush2.bf16.msra.mxu0 0
    %2794 = vmatprep.subr.bf16.mxu0 0
    %2795 = vmatpush2.bf16.msra.mxu0 0
    %2796 = vmatprep.mubr.bf16.mxu0 0
    %2797 = vmatmul.mubr.bf16.gmra.mxu0 %v2311
    %v2798 = vpop.f32.mrf.mxu0
    %v2799 = vadd.f32 %v2758, %v2798
    %v2800 = vpop.f32.mrf.mxu0
    %v2801 = vadd.f32 %v2760, %v2800
    %v2802 = vpop.f32.mrf.mxu0
    %v2803 = vpop.f32.mrf.mxu0
    %2804 = vdwg.mxu0
    %2805 = vmatprep.subr.bf16.mxu0 0
    %2806 = vmatpush1.bf16.msra.mxu0 %v1678
    %2807 = vmatprep.subr.bf16.mxu0 0
    %2808 = vmatpush1.bf16.msra.mxu0 %v1671
    %2809 = vmatprep.subr.bf16.mxu0 0
    %2810 = vmatpush1.bf16.msra.mxu0 %v1664
    %2811 = vmatprep.subr.bf16.mxu0 0
    %2812 = vmatpush1.bf16.msra.mxu0 %v1657
    %2813 = vmatprep.subr.bf16.mxu0 0
    %2814 = vmatpush1.bf16.msra.mxu0 %v1650
    %2815 = vmatprep.subr.bf16.mxu0 0
    %2816 = vmatpush1.bf16.msra.mxu0 %v1643
    %2817 = vmatprep.subr.bf16.mxu0 0
    %2818 = vmatpush1.bf16.msra.mxu0 %v1636
    %2819 = vmatprep.subr.bf16.mxu0 0
    %2820 = vmatpush1.bf16.msra.mxu0 %v1629
    %2821 = vmatprep.subr.bf16.mxu0 0
    %2822 = vmatpush2.bf16.msra.mxu0 %v1734
    %2823 = vmatprep.subr.bf16.mxu0 0
    %2824 = vmatpush2.bf16.msra.mxu0 %v1727
    %2825 = vmatprep.subr.bf16.mxu0 0
    %2826 = vmatpush2.bf16.msra.mxu0 %v1720
    %2827 = vmatprep.subr.bf16.mxu0 0
    %2828 = vmatpush2.bf16.msra.mxu0 %v1713
    %2829 = vmatprep.subr.bf16.mxu0 0
    %2830 = vmatpush2.bf16.msra.mxu0 %v1706
    %2831 = vmatprep.subr.bf16.mxu0 0
    %2832 = vmatpush2.bf16.msra.mxu0 %v1699
    %2833 = vmatprep.subr.bf16.mxu0 0
    %2834 = vmatpush2.bf16.msra.mxu0 %v1692
    %2835 = vmatprep.subr.bf16.mxu0 0
    %2836 = vmatpush2.bf16.msra.mxu0 %v1685
    %2837 = vmatprep.mubr.bf16.mxu0 %v110
    %2838 = vmatmul.mubr.bf16.gmra.mxu0 %v109
    %v2839 = vpop.f32.mrf.mxu0
    %v2840 = vadd.f32 %v537, %v2839
    %v2841 = vpop.f32.mrf.mxu0
    %v2842 = vpop.f32.mrf.mxu0
    %v2843 = vpop.f32.mrf.mxu0
    %2844 = vdwg.mxu0
    %2845 = vmatprep.subr.bf16.mxu0 0
    %2846 = vmatpush1.bf16.msra.mxu0 %v1790
    %2847 = vmatprep.subr.bf16.mxu0 0
    %2848 = vmatpush1.bf16.msra.mxu0 %v1783
    %2849 = vmatprep.subr.bf16.mxu0 0
    %2850 = vmatpush1.bf16.msra.mxu0 %v1776
    %2851 = vmatprep.subr.bf16.mxu0 0
    %2852 = vmatpush1.bf16.msra.mxu0 %v1769
    %2853 = vmatprep.subr.bf16.mxu0 0
    %2854 = vmatpush1.bf16.msra.mxu0 %v1762
    %2855 = vmatprep.subr.bf16.mxu0 0
    %2856 = vmatpush1.bf16.msra.mxu0 %v1755
    %2857 = vmatprep.subr.bf16.mxu0 0
    %2858 = vmatpush1.bf16.msra.mxu0 %v1748
    %2859 = vmatprep.subr.bf16.mxu0 0
    %2860 = vmatpush1.bf16.msra.mxu0 %v1741
    %2861 = vmatprep.subr.bf16.mxu0 0
    %2862 = vmatpush2.bf16.msra.mxu0 %v1846
    %2863 = vmatprep.subr.bf16.mxu0 0
    %2864 = vmatpush2.bf16.msra.mxu0 %v1839
    %2865 = vmatprep.subr.bf16.mxu0 0
    %2866 = vmatpush2.bf16.msra.mxu0 %v1832
    %2867 = vmatprep.subr.bf16.mxu0 0
    %2868 = vmatpush2.bf16.msra.mxu0 %v1825
    %2869 = vmatprep.subr.bf16.mxu0 0
    %2870 = vmatpush2.bf16.msra.mxu0 %v1818
    %2871 = vmatprep.subr.bf16.mxu0 0
    %2872 = vmatpush2.bf16.msra.mxu0 %v1811
    %2873 = vmatprep.subr.bf16.mxu0 0
    %2874 = vmatpush2.bf16.msra.mxu0 %v1804
    %2875 = vmatprep.subr.bf16.mxu0 0
    %2876 = vmatpush2.bf16.msra.mxu0 %v1797
    %2877 = vmatprep.mubr.bf16.mxu0 %v112
    %2878 = vmatmul.mubr.bf16.gmra.mxu0 %v111
    %v2879 = vpop.f32.mrf.mxu0
    %v2880 = vadd.f32 %v2840, %v2879
    %v2881 = vpop.f32.mrf.mxu0
    %v2882 = vpop.f32.mrf.mxu0
    %v2883 = vpop.f32.mrf.mxu0
    %2884 = vdwg.mxu0
    %2885 = vmatprep.subr.bf16.mxu0 0
    %2886 = vmatpush1.bf16.msra.mxu0 %v1902
    %2887 = vmatprep.subr.bf16.mxu0 0
    %2888 = vmatpush1.bf16.msra.mxu0 %v1895
    %2889 = vmatprep.subr.bf16.mxu0 0
    %2890 = vmatpush1.bf16.msra.mxu0 %v1888
    %2891 = vmatprep.subr.bf16.mxu0 0
    %2892 = vmatpush1.bf16.msra.mxu0 %v1881
    %2893 = vmatprep.subr.bf16.mxu0 0
    %2894 = vmatpush1.bf16.msra.mxu0 %v1874
    %2895 = vmatprep.subr.bf16.mxu0 0
    %2896 = vmatpush1.bf16.msra.mxu0 %v1867
    %2897 = vmatprep.subr.bf16.mxu0 0
    %2898 = vmatpush1.bf16.msra.mxu0 %v1860
    %2899 = vmatprep.subr.bf16.mxu0 0
    %2900 = vmatpush1.bf16.msra.mxu0 %v1853
    %2901 = vmatprep.subr.bf16.mxu0 0
    %2902 = vmatpush2.bf16.msra.mxu0 %v1958
    %2903 = vmatprep.subr.bf16.mxu0 0
    %2904 = vmatpush2.bf16.msra.mxu0 %v1951
    %2905 = vmatprep.subr.bf16.mxu0 0
    %2906 = vmatpush2.bf16.msra.mxu0 %v1944
    %2907 = vmatprep.subr.bf16.mxu0 0
    %2908 = vmatpush2.bf16.msra.mxu0 %v1937
    %2909 = vmatprep.subr.bf16.mxu0 0
    %2910 = vmatpush2.bf16.msra.mxu0 %v1930
    %2911 = vmatprep.subr.bf16.mxu0 0
    %2912 = vmatpush2.bf16.msra.mxu0 %v1923
    %2913 = vmatprep.subr.bf16.mxu0 0
    %2914 = vmatpush2.bf16.msra.mxu0 %v1916
    %2915 = vmatprep.subr.bf16.mxu0 0
    %2916 = vmatpush2.bf16.msra.mxu0 %v1909
    %2917 = vmatprep.mubr.bf16.mxu0 %v114
    %2918 = vmatmul.mubr.bf16.gmra.mxu0 %v113
    %v2919 = vpop.f32.mrf.mxu0
    %v2920 = vadd.f32 %v2880, %v2919
    %v2921 = vpop.f32.mrf.mxu0
    %v2922 = vpop.f32.mrf.mxu0
    %v2923 = vpop.f32.mrf.mxu0
    %2924 = vdwg.mxu0
    %2925 = vmatprep.subr.bf16.mxu0 0
    %2926 = vmatpush1.bf16.msra.mxu0 0
    %2927 = vmatprep.subr.bf16.mxu0 0
    %2928 = vmatpush1.bf16.msra.mxu0 0
    %2929 = vmatprep.subr.bf16.mxu0 0
    %2930 = vmatpush1.bf16.msra.mxu0 0
    %2931 = vmatprep.subr.bf16.mxu0 0
    %2932 = vmatpush1.bf16.msra.mxu0 0
    %2933 = vmatprep.subr.bf16.mxu0 0
    %2934 = vmatpush1.bf16.msra.mxu0 0
    %2935 = vmatprep.subr.bf16.mxu0 0
    %2936 = vmatpush1.bf16.msra.mxu0 0
    %2937 = vmatprep.subr.bf16.mxu0 0
    %2938 = vmatpush1.bf16.msra.mxu0 0
    %2939 = vmatprep.subr.bf16.mxu0 0
    %2940 = vmatpush1.bf16.msra.mxu0 %v1965
    %2941 = vmatprep.subr.bf16.mxu0 0
    %2942 = vmatpush2.bf16.msra.mxu0 0
    %2943 = vmatprep.subr.bf16.mxu0 0
    %2944 = vmatpush2.bf16.msra.mxu0 0
    %2945 = vmatprep.subr.bf16.mxu0 0
    %2946 = vmatpush2.bf16.msra.mxu0 0
    %2947 = vmatprep.subr.bf16.mxu0 0
    %2948 = vmatpush2.bf16.msra.mxu0 0
    %2949 = vmatprep.subr.bf16.mxu0 0
    %2950 = vmatpush2.bf16.msra.mxu0 0
    %2951 = vmatprep.subr.bf16.mxu0 0
    %2952 = vmatpush2.bf16.msra.mxu0 0
    %2953 = vmatprep.subr.bf16.mxu0 0
    %2954 = vmatpush2.bf16.msra.mxu0 0
    %2955 = vmatprep.subr.bf16.mxu0 0
    %2956 = vmatpush2.bf16.msra.mxu0 0
    %2957 = vmatprep.mubr.bf16.mxu0 0
    %2958 = vmatmul.mubr.bf16.gmra.mxu0 %v2311
    %v2959 = vpop.f32.mrf.mxu0
    %v2960 = vadd.f32 %v2920, %v2959
    %v2961 = vpop.f32.mrf.mxu0
    %v2962 = vpop.f32.mrf.mxu0
    %v2963 = vpop.f32.mrf.mxu0
    %2964 = vdwg.mxu0
    %v2965 = vmax.f32 %v2471, 0.0
    %v2966 = vmax.f32 %v2473, 0.0
    %v2967 = vmax.f32 %v2635, 0.0
    %v2968 = vmax.f32 %v2637, 0.0
    %v2969 = vmax.f32 %v2799, 0.0
    %v2970 = vmax.f32 %v2801, 0.0
    %v2971 = vmax.f32 %v2960, 0.0
    %v2972 = vpack.c.bf16 %v2965, %v2965
    %v2973 = vpack.c.bf16 %v2966, %v2966
    %v2974 = vpack.c.bf16 %v2967, %v2967
    %v2975 = vpack.c.bf16 %v2968, %v2968
    %v2976 = vpack.c.bf16 %v2969, %v2969
    %v2977 = vpack.c.bf16 %v2970, %v2970
    %v2978 = vpack.c.bf16 %v2971, %v2971
    %v2979 = vld [vmem:[%s3] sm:$0xf]
    %v2980 = vld [vmem:[%s3 + $0x4] sm:$0xf]
    %v2981 = vld [vmem:[%s3 + $0x8] sm:$0xf]
    %v2982 = vld [vmem:[%s3 + $0xc] sm:$0xf]
    %v2983 = vld [vmem:[%s3 + $0x10] sm:$0xf]
    %v2984 = vld [vmem:[%s3 + $0x14] sm:$0xf]
    %v2985 = vld [vmem:[%s3 + $0x18] sm:$0xf]
    %v2986 = vld [vmem:[%s3 + $0x1c] sm:$0xf]
    %v2987 = vld [vmem:[%s3 + $0x20] sm:$0xf]
    %v2988 = vld [vmem:[%s3 + $0x24] sm:$0xf]
    %v2989 = vld [vmem:[%s3 + $0x28] sm:$0xf]
    %v2990 = vld [vmem:[%s3 + $0x2c] sm:$0xf]
    %v2991 = vld [vmem:[%s3 + $0x30] sm:$0xf]
    %v2992 = vld [vmem:[%s3 + $0x34] sm:$0xf]
    %v2993 = vld [vmem:[%s3 + $0x38] sm:$0xf]
    %v2994 = vld [vmem:[%s3 + $0x3c] sm:$0xf]
    %v2995 = vld [vmem:[%s3 + $0x40] sm:$0xf]
    %v2996 = vld [vmem:[%s3 + $0x44] sm:$0xf]
    %v2997 = vld [vmem:[%s3 + $0x48] sm:$0xf]
    %v2998 = vld [vmem:[%s3 + $0x4c] sm:$0xf]
    %v2999 = vld [vmem:[%s3 + $0x50] sm:$0xf]
    %v3000 = vld [vmem:[%s3 + $0x54] sm:$0xf]
    %v3001 = vld [vmem:[%s3 + $0x58] sm:$0xf]
    %v3002 = vld [vmem:[%s3 + $0x5c] sm:$0xf]
    %v3003 = vld [vmem:[%s3 + $0x60] sm:$0xf]
    %v3004 = vld [vmem:[%s3 + $0x64] sm:$0xf]
    %v3005 = vld [vmem:[%s3 + $0x68] sm:$0xf]
    %v3006 = vld [vmem:[%s3 + $0x6c] sm:$0xf]
    %v3007 = vld [vmem:[%s3 + $0x70] sm:$0xf]
    %v3008 = vld [vmem:[%s3 + $0x74] sm:$0xf]
    %v3009 = vld [vmem:[%s3 + $0x78] sm:$0xf]
    %v3010 = vld [vmem:[%s3 + $0x7c] sm:$0xf]
    %v3011 = vld [vmem:[%s3 + $0x80] sm:$0xf]
    %v3012 = vld [vmem:[%s3 + $0x84] sm:$0xf]
    %v3013 = vld [vmem:[%s3 + $0x88] sm:$0xf]
    %v3014 = vld [vmem:[%s3 + $0x8c] sm:$0xf]
    %v3015 = vld [vmem:[%s3 + $0x90] sm:$0xf]
    %v3016 = vld [vmem:[%s3 + $0x94] sm:$0xf]
    %v3017 = vld [vmem:[%s3 + $0x98] sm:$0xf]
    %v3018 = vld [vmem:[%s3 + $0x9c] sm:$0xf]
    %v3019 = vld [vmem:[%s3 + $0xa0] sm:$0xf]
    %v3020 = vld [vmem:[%s3 + $0xa4] sm:$0xf]
    %v3021 = vld [vmem:[%s3 + $0xa8] sm:$0xf]
    %v3022 = vld [vmem:[%s3 + $0xac] sm:$0xf]
    %v3023 = vld [vmem:[%s3 + $0xb0] sm:$0xf]
    %v3024 = vld [vmem:[%s3 + $0xb4] sm:$0xf]
    %v3025 = vld [vmem:[%s3 + $0xb8] sm:$0xf]
    %v3026 = vld [vmem:[%s3 + $0xbc] sm:$0xf]
    %v3027 = vld [vmem:[%s3 + $0xc0] sm:$0xf]
    %v3028 = vld [vmem:[%s3 + $0xc4] sm:$0xf]
    %v3029 = vld [vmem:[%s3 + $0xc8] sm:$0xf]
    %v3030 = vld [vmem:[%s3 + $0xcc] sm:$0xf]
    %v3031 = vld [vmem:[%s3 + $0xd0] sm:$0xf]
    %v3032 = vld [vmem:[%s3 + $0xd4] sm:$0xf]
    %v3033 = vld [vmem:[%s3 + $0xd8] sm:$0xf]
    %v3034 = vld [vmem:[%s3 + $0xdc] sm:$0xf]
    %v3035 = vld [vmem:[%s3 + $0xe0] sm:$0xf]
    %v3036 = vld [vmem:[%s3 + $0xe4] sm:$0xf]
    %v3037 = vld [vmem:[%s3 + $0xe8] sm:$0xf]
    %v3038 = vld [vmem:[%s3 + $0xec] sm:$0xf]
    %v3039 = vld [vmem:[%s3 + $0xf0] sm:$0xf]
    %v3040 = vld [vmem:[%s3 + $0xf4] sm:$0xf]
    %v3041 = vld [vmem:[%s3 + $0xf8] sm:$0xf]
    %v3042 = vld [vmem:[%s3 + $0xfc] sm:$0xf]
    %v3043 = vld [vmem:[%s3 + $0x100] sm:$0xf]
    %v3044 = vld [vmem:[%s3 + $0x104] sm:$0xf]
    %v3045 = vld [vmem:[%s3 + $0x108] sm:$0xf]
    %v3046 = vld [vmem:[%s3 + $0x10c] sm:$0xf]
    %v3047 = vld [vmem:[%s3 + $0x110] sm:$0xf]
    %v3048 = vld [vmem:[%s3 + $0x114] sm:$0xf]
    %v3049 = vld [vmem:[%s3 + $0x118] sm:$0xf]
    %v3050 = vld [vmem:[%s3 + $0x11c] sm:$0xf]
    %v3051 = vld [vmem:[%s3 + $0x120] sm:$0xf]
    %v3052 = vld [vmem:[%s3 + $0x124] sm:$0xf]
    %v3053 = vld [vmem:[%s3 + $0x128] sm:$0xf]
    %v3054 = vld [vmem:[%s3 + $0x12c] sm:$0xf]
    %v3055 = vld [vmem:[%s3 + $0x130] sm:$0xf]
    %v3056 = vld [vmem:[%s3 + $0x134] sm:$0xf]
    %v3057 = vld [vmem:[%s3 + $0x138] sm:$0xf]
    %v3058 = vld [vmem:[%s3 + $0x13c] sm:$0xf]
    %v3059 = vld [vmem:[%s3 + $0x140] sm:$0xf]
    %v3060 = vld [vmem:[%s3 + $0x144] sm:$0xf]
    %v3061 = vld [vmem:[%s3 + $0x148] sm:$0xf]
    %v3062 = vld [vmem:[%s3 + $0x14c] sm:$0xf]
    %v3063 = vld [vmem:[%s3 + $0x150] sm:$0xf]
    %v3064 = vld [vmem:[%s3 + $0x154] sm:$0xf]
    %v3065 = vld [vmem:[%s3 + $0x158] sm:$0xf]
    %v3066 = vld [vmem:[%s3 + $0x15c] sm:$0xf]
    %v3067 = vld [vmem:[%s3 + $0x160] sm:$0xf]
    %v3068 = vld [vmem:[%s3 + $0x164] sm:$0xf]
    %v3069 = vld [vmem:[%s3 + $0x168] sm:$0xf]
    %v3070 = vld [vmem:[%s3 + $0x16c] sm:$0xf]
    %v3071 = vld [vmem:[%s3 + $0x170] sm:$0xf]
    %v3072 = vld [vmem:[%s3 + $0x174] sm:$0xf]
    %v3073 = vld [vmem:[%s3 + $0x178] sm:$0xf]
    %v3074 = vld [vmem:[%s3 + $0x17c] sm:$0xf]
    %v3075 = vld [vmem:[%s3 + $0x180] sm:$0xf]
    %v3076 = vld [vmem:[%s3 + $0x184] sm:$0xf]
    %v3077 = vld [vmem:[%s3 + $0x188] sm:$0xf]
    %v3078 = vld [vmem:[%s3 + $0x18c] sm:$0xf]
    %v3079 = vld [vmem:[%s3 + $0x190] sm:$0xf]
    %v3080 = vld [vmem:[%s3 + $0x194] sm:$0xf]
    %v3081 = vld [vmem:[%s3 + $0x198] sm:$0xf]
    %v3082 = vld [vmem:[%s3 + $0x19c] sm:$0xf]
    %v3083 = vld [vmem:[%s3 + $0x1a0] sm:$0xf]
    %v3084 = vld [vmem:[%s3 + $0x1a4] sm:$0xf]
    %v3085 = vld [vmem:[%s3 + $0x1a8] sm:$0xf]
    %v3086 = vld [vmem:[%s3 + $0x1ac] sm:$0xf]
    %v3087 = vld [vmem:[%s3 + $0x1b0] sm:$0xf]
    %v3088 = vld [vmem:[%s3 + $0x1b4] sm:$0xf]
    %v3089 = vld [vmem:[%s3 + $0x1b8] sm:$0xf]
    %v3090 = vld [vmem:[%s3 + $0x1bc] sm:$0xf]
    %v3091 = vld [vmem:[#allocation8] sm:$0x1]
    %v3093 = vlaneseq
    %v3094 = vshrl.u32 %v3093, 7
    %v3095 = vsub.s32 0, %v3094
    %v3096 = vrot.slane %v3091, %v3095
    %v3210 = vunpack.c.l.b16 %v2979
    %v3211 = vunpack.c.l.b16 %v2980
    %v3212 = vunpack.c.l.b16 %v2981
    %v3213 = vunpack.c.l.b16 %v2982
    %v3214 = vunpack.c.l.b16 %v2983
    %v3215 = vunpack.c.l.b16 %v2984
    %v3216 = vunpack.c.l.b16 %v2985
    %v3217 = vunpack.c.l.b16 %v2986
    %v3218 = vunpack.c.l.b16 %v2987
    %v3219 = vunpack.c.l.b16 %v2988
    %v3220 = vunpack.c.l.b16 %v2989
    %v3221 = vunpack.c.l.b16 %v2990
    %v3222 = vunpack.c.l.b16 %v2991
    %v3223 = vunpack.c.l.b16 %v2992
    %v3224 = vunpack.c.l.b16 %v2993
    %v3225 = vunpack.c.l.b16 %v2994
    %v3226 = vunpack.c.l.b16 %v2995
    %v3227 = vunpack.c.l.b16 %v2996
    %v3228 = vunpack.c.l.b16 %v2997
    %v3229 = vunpack.c.l.b16 %v2998
    %v3230 = vunpack.c.l.b16 %v2999
    %v3231 = vunpack.c.l.b16 %v3000
    %v3232 = vunpack.c.l.b16 %v3001
    %v3233 = vunpack.c.l.b16 %v3002
    %v3234 = vunpack.c.l.b16 %v3003
    %v3235 = vunpack.c.l.b16 %v3004
    %v3236 = vunpack.c.l.b16 %v3005
    %v3237 = vunpack.c.l.b16 %v3006
    %v3238 = vunpack.c.l.b16 %v3007
    %v3239 = vunpack.c.l.b16 %v3008
    %v3240 = vunpack.c.l.b16 %v3009
    %v3241 = vunpack.c.l.b16 %v3010
    %v3242 = vunpack.c.l.b16 %v3011
    %v3243 = vunpack.c.l.b16 %v3012
    %v3244 = vunpack.c.l.b16 %v3013
    %v3245 = vunpack.c.l.b16 %v3014
    %v3246 = vunpack.c.l.b16 %v3015
    %v3247 = vunpack.c.l.b16 %v3016
    %v3248 = vunpack.c.l.b16 %v3017
    %v3249 = vunpack.c.l.b16 %v3018
    %v3250 = vunpack.c.l.b16 %v3019
    %v3251 = vunpack.c.l.b16 %v3020
    %v3252 = vunpack.c.l.b16 %v3021
    %v3253 = vunpack.c.l.b16 %v3022
    %v3254 = vunpack.c.l.b16 %v3023
    %v3255 = vunpack.c.l.b16 %v3024
    %v3256 = vunpack.c.l.b16 %v3025
    %v3257 = vunpack.c.l.b16 %v3026
    %v3258 = vunpack.c.l.b16 %v3027
    %v3259 = vunpack.c.l.b16 %v3028
    %v3260 = vunpack.c.l.b16 %v3029
    %v3261 = vunpack.c.l.b16 %v3030
    %v3262 = vunpack.c.l.b16 %v3031
    %v3263 = vunpack.c.l.b16 %v3032
    %v3264 = vunpack.c.l.b16 %v3033
    %v3265 = vunpack.c.l.b16 %v3034
    %v3266 = vunpack.c.l.b16 %v3035
    %v3267 = vunpack.c.l.b16 %v3036
    %v3268 = vunpack.c.l.b16 %v3037
    %v3269 = vunpack.c.l.b16 %v3038
    %v3270 = vunpack.c.l.b16 %v3039
    %v3271 = vunpack.c.l.b16 %v3040
    %v3272 = vunpack.c.l.b16 %v3041
    %v3273 = vunpack.c.l.b16 %v3042
    %v3274 = vunpack.c.l.b16 %v3043
    %v3275 = vunpack.c.l.b16 %v3044
    %v3276 = vunpack.c.l.b16 %v3045
    %v3277 = vunpack.c.l.b16 %v3046
    %v3278 = vunpack.c.l.b16 %v3047
    %v3279 = vunpack.c.l.b16 %v3048
    %v3280 = vunpack.c.l.b16 %v3049
    %v3281 = vunpack.c.l.b16 %v3050
    %v3282 = vunpack.c.l.b16 %v3051
    %v3283 = vunpack.c.l.b16 %v3052
    %v3284 = vunpack.c.l.b16 %v3053
    %v3285 = vunpack.c.l.b16 %v3054
    %v3286 = vunpack.c.l.b16 %v3055
    %v3287 = vunpack.c.l.b16 %v3056
    %v3288 = vunpack.c.l.b16 %v3057
    %v3289 = vunpack.c.l.b16 %v3058
    %v3290 = vunpack.c.l.b16 %v3059
    %v3291 = vunpack.c.l.b16 %v3060
    %v3292 = vunpack.c.l.b16 %v3061
    %v3293 = vunpack.c.l.b16 %v3062
    %v3294 = vunpack.c.l.b16 %v3063
    %v3295 = vunpack.c.l.b16 %v3064
    %v3296 = vunpack.c.l.b16 %v3065
    %v3297 = vunpack.c.l.b16 %v3066
    %v3298 = vunpack.c.l.b16 %v3067
    %v3299 = vunpack.c.l.b16 %v3068
    %v3300 = vunpack.c.l.b16 %v3069
    %v3301 = vunpack.c.l.b16 %v3070
    %v3302 = vunpack.c.l.b16 %v3071
    %v3303 = vunpack.c.l.b16 %v3072
    %v3304 = vunpack.c.l.b16 %v3073
    %v3305 = vunpack.c.l.b16 %v3074
    %v3306 = vunpack.c.l.b16 %v3075
    %v3307 = vunpack.c.l.b16 %v3076
    %v3308 = vunpack.c.l.b16 %v3077
    %v3309 = vunpack.c.l.b16 %v3078
    %v3310 = vunpack.c.l.b16 %v3079
    %v3311 = vunpack.c.l.b16 %v3080
    %v3312 = vunpack.c.l.b16 %v3081
    %v3313 = vunpack.c.l.b16 %v3082
    %v3314 = vunpack.c.l.b16 %v3083
    %v3315 = vunpack.c.l.b16 %v3084
    %v3316 = vunpack.c.l.b16 %v3085
    %v3317 = vunpack.c.l.b16 %v3086
    %v3318 = vunpack.c.l.b16 %v3087
    %v3319 = vunpack.c.l.b16 %v3088
    %v3320 = vunpack.c.l.b16 %v3089
    %v3321 = vunpack.c.l.b16 %v3090
    %v3322 = vpack.c.b16 %v3211, %v3210
    %v3323 = vpack.c.b16 %v3213, %v3212
    %v3324 = vpack.c.b16 %v3215, %v3214
    %v3325 = vpack.c.b16 %v3217, %v3216
    %v3326 = vpack.c.b16 %v3219, %v3218
    %v3327 = vpack.c.b16 %v3221, %v3220
    %v3328 = vpack.c.b16 %v3223, %v3222
    %v3329 = vpack.c.b16 %v3225, %v3224
    %v3330 = vpack.c.b16 %v3227, %v3226
    %v3331 = vpack.c.b16 %v3229, %v3228
    %v3332 = vpack.c.b16 %v3231, %v3230
    %v3333 = vpack.c.b16 %v3233, %v3232
    %v3334 = vpack.c.b16 %v3235, %v3234
    %v3335 = vpack.c.b16 %v3237, %v3236
    %v3336 = vpack.c.b16 %v3239, %v3238
    %v3337 = vpack.c.b16 %v3241, %v3240
    %v3338 = vpack.c.b16 %v3243, %v3242
    %v3339 = vpack.c.b16 %v3245, %v3244
    %v3340 = vpack.c.b16 %v3247, %v3246
    %v3341 = vpack.c.b16 %v3249, %v3248
    %v3342 = vpack.c.b16 %v3251, %v3250
    %v3343 = vpack.c.b16 %v3253, %v3252
    %v3344 = vpack.c.b16 %v3255, %v3254
    %v3345 = vpack.c.b16 %v3257, %v3256
    %v3346 = vpack.c.b16 %v3259, %v3258
    %v3347 = vpack.c.b16 %v3261, %v3260
    %v3348 = vpack.c.b16 %v3263, %v3262
    %v3349 = vpack.c.b16 %v3265, %v3264
    %v3350 = vpack.c.b16 %v3267, %v3266
    %v3351 = vpack.c.b16 %v3269, %v3268
    %v3352 = vpack.c.b16 %v3271, %v3270
    %v3353 = vpack.c.b16 %v3273, %v3272
    %v3354 = vpack.c.b16 %v3275, %v3274
    %v3355 = vpack.c.b16 %v3277, %v3276
    %v3356 = vpack.c.b16 %v3279, %v3278
    %v3357 = vpack.c.b16 %v3281, %v3280
    %v3358 = vpack.c.b16 %v3283, %v3282
    %v3359 = vpack.c.b16 %v3285, %v3284
    %v3360 = vpack.c.b16 %v3287, %v3286
    %v3361 = vpack.c.b16 %v3289, %v3288
    %v3362 = vpack.c.b16 %v3291, %v3290
    %v3363 = vpack.c.b16 %v3293, %v3292
    %v3364 = vpack.c.b16 %v3295, %v3294
    %v3365 = vpack.c.b16 %v3297, %v3296
    %v3366 = vpack.c.b16 %v3299, %v3298
    %v3367 = vpack.c.b16 %v3301, %v3300
    %v3368 = vpack.c.b16 %v3303, %v3302
    %v3369 = vpack.c.b16 %v3305, %v3304
    %v3370 = vpack.c.b16 %v3307, %v3306
    %v3371 = vpack.c.b16 %v3309, %v3308
    %v3372 = vpack.c.b16 %v3311, %v3310
    %v3373 = vpack.c.b16 %v3313, %v3312
    %v3374 = vpack.c.b16 %v3315, %v3314
    %v3375 = vpack.c.b16 %v3317, %v3316
    %v3376 = vpack.c.b16 %v3319, %v3318
    %v3377 = vpack.c.b16 %v3321, %v3320
    %3434 = vmatprep.subr.bf16.mxu0 0
    %3435 = vmatpush1.bf16.msra.mxu0 %v3329
    %3436 = vmatprep.subr.bf16.mxu0 0
    %3437 = vmatpush1.bf16.msra.mxu0 %v3328
    %3438 = vmatprep.subr.bf16.mxu0 0
    %3439 = vmatpush1.bf16.msra.mxu0 %v3327
    %3440 = vmatprep.subr.bf16.mxu0 0
    %3441 = vmatpush1.bf16.msra.mxu0 %v3326
    %3442 = vmatprep.subr.bf16.mxu0 0
    %3443 = vmatpush1.bf16.msra.mxu0 %v3325
    %3444 = vmatprep.subr.bf16.mxu0 0
    %3445 = vmatpush1.bf16.msra.mxu0 %v3324
    %3446 = vmatprep.subr.bf16.mxu0 0
    %3447 = vmatpush1.bf16.msra.mxu0 %v3323
    %3448 = vmatprep.subr.bf16.mxu0 0
    %3449 = vmatpush1.bf16.msra.mxu0 %v3322
    %3450 = vmatprep.subr.bf16.mxu0 0
    %3451 = vmatpush2.bf16.msra.mxu0 %v3337
    %3452 = vmatprep.subr.bf16.mxu0 0
    %3453 = vmatpush2.bf16.msra.mxu0 %v3336
    %3454 = vmatprep.subr.bf16.mxu0 0
    %3455 = vmatpush2.bf16.msra.mxu0 %v3335
    %3456 = vmatprep.subr.bf16.mxu0 0
    %3457 = vmatpush2.bf16.msra.mxu0 %v3334
    %3458 = vmatprep.subr.bf16.mxu0 0
    %3459 = vmatpush2.bf16.msra.mxu0 %v3333
    %3460 = vmatprep.subr.bf16.mxu0 0
    %3461 = vmatpush2.bf16.msra.mxu0 %v3332
    %3462 = vmatprep.subr.bf16.mxu0 0
    %3463 = vmatpush2.bf16.msra.mxu0 %v3331
    %3464 = vmatprep.subr.bf16.mxu0 0
    %3465 = vmatpush2.bf16.msra.mxu0 %v3330
    %3466 = vmatprep.mubr.bf16.mxu0 %v2973
    %3467 = vmatmul.mubr.bf16.gmra.mxu0 %v2972
    %v3468 = vpop.f32.mrf.mxu0
    %v3469 = vadd.f32 %v3096, %v3468
    %v3470 = vpop.f32.mrf.mxu0
    %v3471 = vpop.f32.mrf.mxu0
    %v3472 = vpop.f32.mrf.mxu0
    %3473 = vdwg.mxu0
    %3474 = vmatprep.subr.bf16.mxu0 0
    %3475 = vmatpush1.bf16.msra.mxu0 %v3345
    %3476 = vmatprep.subr.bf16.mxu0 0
    %3477 = vmatpush1.bf16.msra.mxu0 %v3344
    %3478 = vmatprep.subr.bf16.mxu0 0
    %3479 = vmatpush1.bf16.msra.mxu0 %v3343
    %3480 = vmatprep.subr.bf16.mxu0 0
    %3481 = vmatpush1.bf16.msra.mxu0 %v3342
    %3482 = vmatprep.subr.bf16.mxu0 0
    %3483 = vmatpush1.bf16.msra.mxu0 %v3341
    %3484 = vmatprep.subr.bf16.mxu0 0
    %3485 = vmatpush1.bf16.msra.mxu0 %v3340
    %3486 = vmatprep.subr.bf16.mxu0 0
    %3487 = vmatpush1.bf16.msra.mxu0 %v3339
    %3488 = vmatprep.subr.bf16.mxu0 0
    %3489 = vmatpush1.bf16.msra.mxu0 %v3338
    %3490 = vmatprep.subr.bf16.mxu0 0
    %3491 = vmatpush2.bf16.msra.mxu0 %v3353
    %3492 = vmatprep.subr.bf16.mxu0 0
    %3493 = vmatpush2.bf16.msra.mxu0 %v3352
    %3494 = vmatprep.subr.bf16.mxu0 0
    %3495 = vmatpush2.bf16.msra.mxu0 %v3351
    %3496 = vmatprep.subr.bf16.mxu0 0
    %3497 = vmatpush2.bf16.msra.mxu0 %v3350
    %3498 = vmatprep.subr.bf16.mxu0 0
    %3499 = vmatpush2.bf16.msra.mxu0 %v3349
    %3500 = vmatprep.subr.bf16.mxu0 0
    %3501 = vmatpush2.bf16.msra.mxu0 %v3348
    %3502 = vmatprep.subr.bf16.mxu0 0
    %3503 = vmatpush2.bf16.msra.mxu0 %v3347
    %3504 = vmatprep.subr.bf16.mxu0 0
    %3505 = vmatpush2.bf16.msra.mxu0 %v3346
    %3506 = vmatprep.mubr.bf16.mxu0 %v2975
    %3507 = vmatmul.mubr.bf16.gmra.mxu0 %v2974
    %v3508 = vpop.f32.mrf.mxu0
    %v3509 = vadd.f32 %v3469, %v3508
    %v3510 = vpop.f32.mrf.mxu0
    %v3511 = vpop.f32.mrf.mxu0
    %v3512 = vpop.f32.mrf.mxu0
    %3513 = vdwg.mxu0
    %3514 = vmatprep.subr.bf16.mxu0 0
    %3515 = vmatpush1.bf16.msra.mxu0 %v3361
    %3516 = vmatprep.subr.bf16.mxu0 0
    %3517 = vmatpush1.bf16.msra.mxu0 %v3360
    %3518 = vmatprep.subr.bf16.mxu0 0
    %3519 = vmatpush1.bf16.msra.mxu0 %v3359
    %3520 = vmatprep.subr.bf16.mxu0 0
    %3521 = vmatpush1.bf16.msra.mxu0 %v3358
    %3522 = vmatprep.subr.bf16.mxu0 0
    %3523 = vmatpush1.bf16.msra.mxu0 %v3357
    %3524 = vmatprep.subr.bf16.mxu0 0
    %3525 = vmatpush1.bf16.msra.mxu0 %v3356
    %3526 = vmatprep.subr.bf16.mxu0 0
    %3527 = vmatpush1.bf16.msra.mxu0 %v3355
    %3528 = vmatprep.subr.bf16.mxu0 0
    %3529 = vmatpush1.bf16.msra.mxu0 %v3354
    %3530 = vmatprep.subr.bf16.mxu0 0
    %3531 = vmatpush2.bf16.msra.mxu0 %v3369
    %3532 = vmatprep.subr.bf16.mxu0 0
    %3533 = vmatpush2.bf16.msra.mxu0 %v3368
    %3534 = vmatprep.subr.bf16.mxu0 0
    %3535 = vmatpush2.bf16.msra.mxu0 %v3367
    %3536 = vmatprep.subr.bf16.mxu0 0
    %3537 = vmatpush2.bf16.msra.mxu0 %v3366
    %3538 = vmatprep.subr.bf16.mxu0 0
    %3539 = vmatpush2.bf16.msra.mxu0 %v3365
    %3540 = vmatprep.subr.bf16.mxu0 0
    %3541 = vmatpush2.bf16.msra.mxu0 %v3364
    %3542 = vmatprep.subr.bf16.mxu0 0
    %3543 = vmatpush2.bf16.msra.mxu0 %v3363
    %3544 = vmatprep.subr.bf16.mxu0 0
    %3545 = vmatpush2.bf16.msra.mxu0 %v3362
    %3546 = vmatprep.mubr.bf16.mxu0 %v2977
    %3547 = vmatmul.mubr.bf16.gmra.mxu0 %v2976
    %v3548 = vpop.f32.mrf.mxu0
    %v3549 = vadd.f32 %v3509, %v3548
    %v3550 = vpop.f32.mrf.mxu0
    %v3551 = vpop.f32.mrf.mxu0
    %v3552 = vpop.f32.mrf.mxu0
    %3553 = vdwg.mxu0
    %3554 = vmatprep.subr.bf16.mxu0 0
    %3555 = vmatpush1.bf16.msra.mxu0 %v3377
    %3556 = vmatprep.subr.bf16.mxu0 0
    %3557 = vmatpush1.bf16.msra.mxu0 %v3376
    %3558 = vmatprep.subr.bf16.mxu0 0
    %3559 = vmatpush1.bf16.msra.mxu0 %v3375
    %3560 = vmatprep.subr.bf16.mxu0 0
    %3561 = vmatpush1.bf16.msra.mxu0 %v3374
    %3562 = vmatprep.subr.bf16.mxu0 0
    %3563 = vmatpush1.bf16.msra.mxu0 %v3373
    %3564 = vmatprep.subr.bf16.mxu0 0
    %3565 = vmatpush1.bf16.msra.mxu0 %v3372
    %3566 = vmatprep.subr.bf16.mxu0 0
    %3567 = vmatpush1.bf16.msra.mxu0 %v3371
    %3568 = vmatprep.subr.bf16.mxu0 0
    %3569 = vmatpush1.bf16.msra.mxu0 %v3370
    %3570 = vmatprep.subr.bf16.mxu0 0
    %3571 = vmatpush2.bf16.msra.mxu0 0
    %3572 = vmatprep.subr.bf16.mxu0 0
    %3573 = vmatpush2.bf16.msra.mxu0 0
    %3574 = vmatprep.subr.bf16.mxu0 0
    %3575 = vmatpush2.bf16.msra.mxu0 0
    %3576 = vmatprep.subr.bf16.mxu0 0
    %3577 = vmatpush2.bf16.msra.mxu0 0
    %3578 = vmatprep.subr.bf16.mxu0 0
    %3579 = vmatpush2.bf16.msra.mxu0 0
    %3580 = vmatprep.subr.bf16.mxu0 0
    %3581 = vmatpush2.bf16.msra.mxu0 0
    %3582 = vmatprep.subr.bf16.mxu0 0
    %3583 = vmatpush2.bf16.msra.mxu0 0
    %3584 = vmatprep.subr.bf16.mxu0 0
    %3585 = vmatpush2.bf16.msra.mxu0 0
    %3586 = vmatprep.mubr.bf16.mxu0 0
    %3587 = vmatmul.mubr.bf16.gmra.mxu0 %v2978
    %v3588 = vpop.f32.mrf.mxu0
    %v3589 = vadd.f32 %v3549, %v3588
    %v3590 = vpop.f32.mrf.mxu0
    %v3591 = vpop.f32.mrf.mxu0
    %v3592 = vpop.f32.mrf.mxu0
    %3593 = vdwg.mxu0
    %v3594 = vmax.f32 %v3589, 0.0
    %v3595 = vpack.c.bf16 %v3594, %v3594
    %v3596 = vld [vmem:[#allocation10] sm:$0xf]
    %v3597 = vld [vmem:[#allocation10 + $0x4] sm:$0xf]
    %v3598 = vld [vmem:[#allocation10 + $0x8] sm:$0xf]
    %v3599 = vld [vmem:[#allocation10 + $0xc] sm:$0xf]
    %v3600 = vld [vmem:[#allocation11] sm:$0x1]
    %v3602 = vlaneseq
    %v3603 = vshrl.u32 %v3602, 7
    %v3604 = vsub.s32 0, %v3603
    %v3605 = vrot.slane %v3600, %v3604
    %v3611 = vunpack.c.l.b16 %v3596
    %v3612 = vunpack.c.l.b16 %v3597
    %v3613 = vunpack.c.l.b16 %v3598
    %v3614 = vunpack.c.l.b16 %v3599
    %v3615 = vpack.c.b16 %v3612, %v3611
    %v3616 = vpack.c.b16 %v3614, %v3613
    %vm3619 = vcmask 261120
    %v3621 = vsel %vm3619, %v3595, 0
    %3623 = vmatprep.subr.bf16.mxu0 0
    %3624 = vmatpush1.bf16.msra.mxu0 0
    %3625 = vmatprep.subr.bf16.mxu0 0
    %3626 = vmatpush1.bf16.msra.mxu0 0
    %3627 = vmatprep.subr.bf16.mxu0 0
    %3628 = vmatpush1.bf16.msra.mxu0 0
    %3629 = vmatprep.subr.bf16.mxu0 0
    %3630 = vmatpush1.bf16.msra.mxu0 0
    %3631 = vmatprep.subr.bf16.mxu0 0
    %3632 = vmatpush1.bf16.msra.mxu0 0
    %3633 = vmatprep.subr.bf16.mxu0 0
    %3634 = vmatpush1.bf16.msra.mxu0 0
    %3635 = vmatprep.subr.bf16.mxu0 0
    %3636 = vmatpush1.bf16.msra.mxu0 %v3616
    %3637 = vmatprep.subr.bf16.mxu0 0
    %3638 = vmatpush1.bf16.msra.mxu0 %v3615
    %3639 = vmatprep.subr.bf16.mxu0 0
    %3640 = vmatpush2.bf16.msra.mxu0 0
    %3641 = vmatprep.subr.bf16.mxu0 0
    %3642 = vmatpush2.bf16.msra.mxu0 0
    %3643 = vmatprep.subr.bf16.mxu0 0
    %3644 = vmatpush2.bf16.msra.mxu0 0
    %3645 = vmatprep.subr.bf16.mxu0 0
    %3646 = vmatpush2.bf16.msra.mxu0 0
    %3647 = vmatprep.subr.bf16.mxu0 0
    %3648 = vmatpush2.bf16.msra.mxu0 0
    %3649 = vmatprep.subr.bf16.mxu0 0
    %3650 = vmatpush2.bf16.msra.mxu0 0
    %3651 = vmatprep.subr.bf16.mxu0 0
    %3652 = vmatpush2.bf16.msra.mxu0 0
    %3653 = vmatprep.subr.bf16.mxu0 0
    %3654 = vmatpush2.bf16.msra.mxu0 0
    %3655 = vmatprep.mubr.bf16.mxu0 0
    %3656 = vmatmul.mubr.bf16.gmra.mxu0 %v3621
    %v3657 = vpop.f32.mrf.mxu0
    %v3658 = vadd.f32 %v3605, %v3657
    %v3659 = vpop.f32.mrf.mxu0
    %v3660 = vpop.f32.mrf.mxu0
    %v3661 = vpop.f32.mrf.mxu0
    %3662 = vdwg.mxu0
    %3663 = vst [vmem:[#allocation13] sm:$0xff] %v3658
    // Predicated region
    $region54: #{tpu_custom_call.1} parent=1 // pred_check
      _
    $region55: #{tpu_custom_call.1} parent=1 // pred_check_branch
      %3665 = sbr.rel (0) target = $region57
    $region56: #{tpu_custom_call.1} parent=1 // pred_region
      %s3667 = ssub.s32 128, 128
      %3668 = vsyncadd [#allocation4], %s3667
      %s3670 = sshll.u32 [#allocation13], 4
      %s3671 = int_to_ptr.vmem [resolvable:$true] %s3670
      %3673 = dma.vmem_to_hbm [thread:$0]  %s3671, 128, %s7, [#allocation4]
    $region57: #{tpu_custom_call.1} parent=1 // pred_fallthru
      _
    // Predicated region
    $region58: #{tpu_custom_call.1} parent=1 // pred_check
      _
    $region59: #{tpu_custom_call.1} parent=1 // pred_check_branch
      %3675 = sbr.rel (0) target = $region61
    $region60: #{tpu_custom_call.1} parent=1 // pred_region
      %3676 = dma.done [#allocation4], 128
    $region61: #{tpu_custom_call.1} parent=1 // pred_fallthru
      _
    %3677 = vsyncpa [#allocation3], 1
    %3678 = vsyncpa [#allocation6], 1
    %3679 = vsyncpa [#allocation9], 1
    %3680 = vsyncpa [#allocation12], 1
    %3681 = vsyncpa [#allocation4], 1

</llo_original>
